<compile_context>
chip_gen: v6e
topology: v6e:2x2x1
jax: 0.10.0
libtpu: 0.0.40
codegen_flags: <defaults>
</compile_context>

<pallas_src>
import functools
from math import sqrt

import jax
import jax.numpy as jnp
from jax.experimental import pallas as pl
from jax.experimental.pallas import tpu as pltpu


def _round_up(x, m):
    return ((x + m - 1) // m) * m


def _pick_tile(dim, unit, cap):
    """Largest tile <= cap that is a multiple of `unit` and divides `dim`.
    Falls back to the full extent when `dim` is not `unit`-divisible (a block dim
    equal to the full array dim needs no (8,128) alignment)."""
    if dim % unit != 0:
        return dim
    t = min(cap, dim)
    t = max(unit, (t // unit) * unit)
    while dim % t != 0:
        t -= unit
    return t


def _vmem_capacity_bytes():
    try:
        return int(pltpu.get_tpu_info().vmem_capacity_bytes)
    except Exception:
        return 64 << 20  # conservative default: v7x per-TensorCore VMEM


# --------------------------------------------------------------------------- #
# Kernel 1: tiled GEMM, optionally fused with noise injection + LeakyReLU(0.2)
#   y = x @ w  (+ bias)  [+ noise_col * noise_row, then leaky-relu]
#   (the equal-lr scale is already folded into w by the wrapper)
# --------------------------------------------------------------------------- #
def _gemm_kernel(*refs, fuse_noise, neg_slope):
    if fuse_noise:
        x_ref, w_ref, b_ref, nz_ref, nw_ref, o_ref, acc_ref = refs
    else:
        x_ref, w_ref, b_ref, o_ref, acc_ref = refs

    k = pl.program_id(2)

    @pl.when(k == 0)
    def _():
        acc_ref[...] = jnp.zeros_like(acc_ref)

    # Operands arrive pre-scaled and in the MXU compute dtype (bf16 by default);
    # accumulate in f32.
    acc_ref[...] += jnp.dot(x_ref[...], w_ref[...],
                            preferred_element_type=jnp.float32)

    @pl.when(k == pl.num_programs(2) - 1)
    def _():
        y = acc_ref[...] + b_ref[...]
        if fuse_noise:
            # Equal-lr NoiseInjection as an outer product: per-row noise x per-channel w.
            y = y + nz_ref[...] * nw_ref[...]
            y = jnp.where(y >= 0.0, y, neg_slope * y)        # LeakyReLU(0.2)
        o_ref[...] = y.astype(o_ref.dtype)


def scaled_matmul(x, w_t, bias, *, scale, compute_dtype, out_dtype,
                  noise_col=None, noise_row=None,
                  tm_cap=512, tn_cap=512, tk_cap=1024):
    """y = x @ (w_t * scale) + bias [+ noise_col * noise_row, then LeakyReLU(0.2)].

    x: (M, K); w_t: (K, N); bias: (N,); noise_col: (M, 1); noise_row: (1, N)."""
    M, K = x.shape
    K2, N = w_t.shape
    assert K == K2 and bias.shape == (N,)
    fuse = noise_col is not None

    csize = jnp.dtype(compute_dtype).itemsize
    osize = jnp.dtype(out_dtype).itemsize

    # Equal-lr scale folded into the weight at cast time (no per-tile VPU multiply).
    xq = x.astype(compute_dtype)
    wq = (w_t * scale).astype(compute_dtype)
    b2 = bias.astype(jnp.float32).reshape(1, N)

    # N/K tiles: divisors (or the full extent when not 128-divisible -> no pad copies,
    # and the K reduction never sees garbage). Only M is zero-padded (rows discarded).
    tn = _pick_tile(N, 128, tn_cap)
    tk = _pick_tile(K, 128, tk_cap)
    m_unit = 16 if csize == 2 else 8             # bf16 sublane packing
    tm = min(tm_cap, _round_up(M, m_unit))
    Mp = _round_up(M, tm)
    if Mp != M:
        xq = jnp.pad(xq, ((0, Mp - M), (0, 0)))

    inputs = [xq, wq, b2]
    in_specs = [
        pl.BlockSpec((tm, tk), lambda i, j, k: (i, k)),
        pl.BlockSpec((tk, tn), lambda i, j, k: (k, j)),
        pl.BlockSpec((1, tn), lambda i, j, k: (0, j)),
    ]
    if fuse:
        nz = noise_col.astype(jnp.float32)
        if Mp != M:
            nz = jnp.pad(nz, ((0, Mp - M), (0, 0)))
        nw = noise_row.astype(jnp.float32).reshape(1, N)
        inputs += [nz, nw]
        in_specs += [
            pl.BlockSpec((tm, 1), lambda i, j, k: (i, 0)),
            pl.BlockSpec((1, tn), lambda i, j, k: (0, j)),
        ]

    grid = (Mp // tm, N // tn, K // tk)

    # Double-buffered VMEM footprint; keep it well under v7x's 64 MiB.
    est = (2 * (tm * tk + tk * tn) * csize + 2 * tm * tn * osize
           + tm * tn * 4 + 4 * (tm + 3 * tn))
    vmem_limit = int(min(48 << 20, max(16 << 20, est + (8 << 20))))

    cost = pl.CostEstimate(
        flops=int(2 * Mp * N * K), transcendentals=0,
        bytes_accessed=int(xq.size * csize + wq.size * csize + Mp * N * osize))

    out = pl.pallas_call(
        functools.partial(_gemm_kernel, fuse_noise=fuse, neg_slope=0.2),
        out_shape=jax.ShapeDtypeStruct((Mp, N), out_dtype),
        grid_spec=pltpu.PrefetchScalarGridSpec(
            num_scalar_prefetch=0,
            grid=grid,
            in_specs=in_specs,
            out_specs=pl.BlockSpec((tm, tn), lambda i, j, k: (i, j)),
            scratch_shapes=[pltpu.VMEM((tm, tn), jnp.float32)],
        ),
        compiler_params=pltpu.CompilerParams(
            # M/N axes "parallel" so v7x's two TensorCores can split the work;
            # the K reduction stays "arbitrary" and last.
            dimension_semantics=("parallel", "parallel", "arbitrary"),
            vmem_limit_bytes=vmem_limit,
        ),
        cost_estimate=cost,
    )(*inputs)
    return out[:M] if Mp != M else out


# --------------------------------------------------------------------------- #
# Kernel 2: InstanceNorm2d(eps=1e-5, biased var) + AdaIN affine
#   channels-last: block = one (batch, channel-tile) slab, reduce over H*W
# --------------------------------------------------------------------------- #
def _in_adain_kernel(h_ref, g_ref, b_ref, o_ref, *, eps, inv_hw):
    y = h_ref[...].astype(jnp.float32)                      # (1, HW, ct), stats in f32
    # One sweep over the tile: first and second moments from the same vregs.
    mean = jnp.sum(y, axis=1, keepdims=True) * inv_hw
    m2 = jnp.sum(y * y, axis=1, keepdims=True) * inv_hw
    var = jnp.maximum(m2 - mean * mean, 0.0)                # biased (InstanceNorm2d)
    norm = (y - mean) * jax.lax.rsqrt(var + eps)
    o_ref[...] = (g_ref[...] * norm + b_ref[...]).astype(o_ref.dtype)


def instance_adain(h3, gamma, beta, *, out_dtype, eps=1e-5):
    """h3: (N, HW, C) channels-last rows; gamma/beta: (N, C)."""
    N, HW, C = h3.shape
    csize = jnp.dtype(h3.dtype).itemsize
    osize = jnp.dtype(out_dtype).itemsize

    # Channel tile sized against a generation-aware VMEM budget (v7x: 64 MiB total).
    budget = max(8 << 20, min(_vmem_capacity_bytes() // 3, 32 << 20))
    per_ct = 2 * HW * (csize + osize)            # double-buffered in + out, per channel
    ct_cap = max(128, (budget // per_ct) // 128 * 128)
    ct = _pick_tile(C, 128, ct_cap)
    # TODO(synk): if HW grows so large that even ct=128 exceeds the budget (beyond this
    # model's 128x128 max resolution), switch to a two-pass streaming-stats epilogue.

    est = 2 * HW * ct * (csize + osize) + 8 * ct * 4
    vmem_limit = int(min(48 << 20, max(16 << 20, est + (8 << 20))))

    g3 = gamma.astype(jnp.float32).reshape(N, 1, C)
    b3 = beta.astype(jnp.float32).reshape(N, 1, C)

    return pl.pallas_call(
        functools.partial(_in_adain_kernel, eps=eps, inv_hw=1.0 / HW),
        out_shape=jax.ShapeDtypeStruct((N, HW, C), out_dtype),
        grid_spec=pltpu.PrefetchScalarGridSpec(
            num_scalar_prefetch=0,
            grid=(N, C // ct),
            in_specs=[
                pl.BlockSpec((1, HW, ct), lambda n, c: (n, 0, c)),
                pl.BlockSpec((1, 1, ct), lambda n, c: (n, 0, c)),
                pl.BlockSpec((1, 1, ct), lambda n, c: (n, 0, c)),
            ],
            out_specs=pl.BlockSpec((1, HW, ct), lambda n, c: (n, 0, c)),
        ),
        compiler_params=pltpu.CompilerParams(
            dimension_semantics=("parallel", "parallel"),
            vmem_limit_bytes=vmem_limit,
        ),
    )(h3, g3, b3)


# --------------------------------------------------------------------------- #
# Module pieces built on the two kernels (channels-last throughout)
# --------------------------------------------------------------------------- #
def _im2col_nhwc(x_nhwc, ks, pad):
    """(N, H, W, C) -> (N*H*W, ks*ks*C) patches (stride 1, symmetric zero padding)."""
    # TODO(synk): the patch matrix is still materialized by XLA (9x K expansion); a
    # halo-window DMA conv kernel would remove this HBM round trip entirely.
    N, H, W, C = x_nhwc.shape
    xp = jnp.pad(x_nhwc, ((0, 0), (pad, pad), (pad, pad), (0, 0)))
    cols = [xp[:, dy:dy + H, dx:dx + W, :] for dy in range(ks) for dx in range(ks)]
    patches = jnp.concatenate(cols, axis=-1)                 # (N, H, W, ks*ks*C)
    return patches.reshape(N * H * W, ks * ks * C)


def conv_noise_lrelu(x_nhwc, w_orig, bias, noise_col, noise_w_orig, *, compute_dtype):
    """EqualConv2d(3x3, pad=1) + equal-lr NoiseInjection + LeakyReLU(0.2), all fused
    into one tiled GEMM. Output stays in channels-last (N, H, W, Cout)."""
    N, H, W, Cin = x_nhwc.shape
    Cout, _, kh, kw = w_orig.shape
    conv_scale = sqrt(2.0 / (Cin * kh * kw))                 # EqualConv2d equal-lr scale
    patches = _im2col_nhwc(x_nhwc.astype(compute_dtype), kh, pad=kh // 2)
    w_t = jnp.transpose(w_orig, (2, 3, 1, 0)).reshape(kh * kw * Cin, Cout)
    nw_row = noise_w_orig.reshape(1, Cout) * sqrt(2.0 / Cout)  # NoiseInjection equal-lr
    y = scaled_matmul(patches, w_t, bias, scale=conv_scale,
                      compute_dtype=compute_dtype, out_dtype=compute_dtype,
                      noise_col=noise_col, noise_row=nw_row)
    return y.reshape(N, H, W, Cout)


@functools.partial(jax.jit, static_argnames=("compute_dtype",))
def styled_conv_block(x_nchw, params, noise, style, compute_dtype=jnp.bfloat16):
    """StyledConvBlock forward (initial=False, upsample=False).
    x_nchw: (N, Cin, H, W); noise: (N, 1, H, W); style: (N, style_dim)."""
    N, Cin, H, W = x_nchw.shape
    Cout = params["conv1_w"].shape[0]
    HW = H * W

    # Single layout conversion in; everything in between stays channels-last.
    x = jnp.transpose(x_nchw, (0, 2, 3, 1))
    nz_col = noise.reshape(N * HW, 1)            # per-row noise, broadcast over C in-kernel

    # Both AdaIN style projections (EqualLinear) in one GEMM: concat along the out dim.
    sw = jnp.concatenate([params["style1_w"], params["style2_w"]], axis=0)   # (4C, S)
    sb = jnp.concatenate([params["style1_b"], params["style2_b"]], axis=0)   # (4C,)
    styles = scaled_matmul(style, sw.T, sb, scale=sqrt(2.0 / sw.shape[1]),
                           compute_dtype=compute_dtype, out_dtype=jnp.float32)
    g1, b1 = styles[:, :Cout], styles[:, Cout:2 * Cout]
    g2, b2 = styles[:, 2 * Cout:3 * Cout], styles[:, 3 * Cout:]

    h = conv_noise_lrelu(x, params["conv1_w"], params["conv1_b"], nz_col,
                         params["noise1_w"], compute_dtype=compute_dtype)
    h = instance_adain(h.reshape(N, HW, Cout), g1, b1, out_dtype=compute_dtype)
    h = conv_noise_lrelu(h.reshape(N, H, W, Cout), params["conv2_w"], params["conv2_b"],
                         nz_col, params["noise2_w"], compute_dtype=compute_dtype)
    h = instance_adain(h.reshape(N, HW, Cout), g2, b2, out_dtype=x_nchw.dtype)

    # Single layout conversion out (PyTorch NCHW parity).
    return jnp.transpose(h.reshape(N, H, W, Cout), (0, 3, 1, 2))


# --------------------------------------------------------------------------- #
# Pure-JAX reference (f32, HIGHEST precision)
# --------------------------------------------------------------------------- #
def _ref_styled_conv_block(x, params, noise, style, eps=1e-5):
    hi = jax.lax.Precision.HIGHEST

    def conv(h, w, b):
        scale = sqrt(2.0 / (w.shape[1] * w.shape[2] * w.shape[3]))
        y = jax.lax.conv_general_dilated(
            h, w * scale, window_strides=(1, 1), padding=((1, 1), (1, 1)),
            dimension_numbers=("NCHW", "OIHW", "NCHW"), precision=hi)
        return y + b[None, :, None, None]

    def adain(h, w_s, b_s):
        C = h.shape[1]
        s = jnp.dot(style, (w_s * sqrt(2.0 / w_s.shape[1])).T, precision=hi) + b_s
        gamma = s[:, :C][:, :, None, None]
        beta = s[:, C:][:, :, None, None]
        mu = h.mean(axis=(2, 3), keepdims=True)
        var = h.var(axis=(2, 3), keepdims=True)
        return gamma * (h - mu) / jnp.sqrt(var + eps) + beta

    def half(h, cw, cb, nw, sw, sb):
        h = conv(h, cw, cb)
        h = h + (nw * sqrt(2.0 / h.shape[1])) * noise
        h = jnp.where(h >= 0, h, 0.2 * h)
        return adain(h, sw, sb)

    h = half(x, params["conv1_w"], params["conv1_b"], params["noise1_w"],
             params["style1_w"], params["style1_b"])
    h = half(h, params["conv2_w"], params["conv2_b"], params["noise2_w"],
             params["style2_w"], params["style2_b"])
    return h


if __name__ == "__main__":
    key = jax.random.PRNGKey(0)
    ks = jax.random.split(key, 11)

    N, Cin, Cout, H, W = 2, 4, 4, 16, 16
    style_dim = 128  # CODE_SIZE

    style_bias = jnp.concatenate(
        [jnp.ones((Cout,), jnp.float32), jnp.zeros((Cout,), jnp.float32)])
    params = dict(
        conv1_w=jax.random.normal(ks[0], (Cout, Cin, 3, 3), jnp.float32),
        conv1_b=0.1 * jax.random.normal(ks[1], (Cout,), jnp.float32),
        conv2_w=jax.random.normal(ks[2], (Cout, Cout, 3, 3), jnp.float32),
        conv2_b=0.1 * jax.random.normal(ks[3], (Cout,), jnp.float32),
        # Non-zero noise weights so the equal-lr noise-injection path is actually
        # exercised (the PyTorch module zero-inits them, which would hide bugs here).
        noise1_w=0.5 * jax.random.normal(ks[4], (1, Cout, 1, 1), jnp.float32),
        noise2_w=0.5 * jax.random.normal(ks[5], (1, Cout, 1, 1), jnp.float32),
        style1_w=jax.random.normal(ks[6], (2 * Cout, style_dim), jnp.float32),
        style1_b=style_bias,
        style2_w=jax.random.normal(ks[7], (2 * Cout, style_dim), jnp.float32),
        style2_b=style_bias,
    )

    x = jax.random.normal(ks[8], (N, Cin, H, W), jnp.float32)
    style = jax.random.normal(ks[9], (N, style_dim), jnp.float32)
    noise = jax.random.normal(ks[10], (N, 1, H, W), jnp.float32)

    ref = jax.block_until_ready(_ref_styled_conv_block(x, params, noise, style))

    # f32 MXU path: tight check against the HIGHEST-precision reference.
    out_f32 = jax.block_until_ready(
        styled_conv_block(x, params, noise, style, compute_dtype=jnp.float32))
    assert out_f32.shape == (N, Cout, H, W)
    err_f32 = float(jnp.max(jnp.abs(out_f32 - ref)))
    assert jnp.allclose(out_f32, ref, atol=2e-3, rtol=2e-3), f"f32 max_err={err_f32}"

    # Default bf16 MXU path: loose check (error relative to the output scale).
    out_bf16 = jax.block_until_ready(styled_conv_block(x, params, noise, style))
    rel = float(jnp.max(jnp.abs(out_bf16 - ref)) / (jnp.max(jnp.abs(ref)) + 1e-6))
    assert rel < 0.12, f"bf16 rel-to-max err={rel}"

    print("KERNEL_OK")
</pallas_src>

<mosaic_0001>
module attributes {stable_mosaic.version = 11 : i64} {
  func.func @_gemm_kernel(%arg0: i32, %arg1: i32, %arg2: i32, %arg3: memref<512x36xf32, #tpu.memory_space<vmem>>, %arg4: memref<36x4xf32, #tpu.memory_space<vmem>>, %arg5: memref<1x4xf32, #tpu.memory_space<vmem>>, %arg6: memref<512x1xf32, #tpu.memory_space<vmem>>, %arg7: memref<1x4xf32, #tpu.memory_space<vmem>>, %arg8: memref<512x4xf32, #tpu.memory_space<vmem>>, %arg9: memref<512x4xf32, #tpu.memory_space<vmem>>) attributes {dimension_semantics = [#tpu.dimension_semantics<parallel>, #tpu.dimension_semantics<parallel>, #tpu.dimension_semantics<arbitrary>], iteration_bounds = array<i64: 1, 1, 1>, scalar_prefetch = 0 : i64, scratch_operands = 1 : i64, tpu.core_type = #tpu.core_type<tc>, window_params = [{transform_indices = @transform_0, window_bounds = array<i64: 512, 36>}, {transform_indices = @transform_1, window_bounds = array<i64: 36, 4>}, {transform_indices = @transform_2, window_bounds = array<i64: 1, 4>}, {transform_indices = @transform_3, window_bounds = array<i64: 512, 1>}, {transform_indices = @transform_4, window_bounds = array<i64: 1, 4>}, {transform_indices = @transform_5, window_bounds = array<i64: 512, 4>}]} {
    %c0_i32 = arith.constant 0 : i32
    %0 = arith.cmpi eq, %arg2, %c0_i32 : i32
    %1 = arith.extui %0 : i1 to i32
    %c0_i32_0 = arith.constant 0 : i32
    %2 = arith.cmpi ne, %1, %c0_i32_0 : i32
    scf.if %2 {
      %cst_10 = arith.constant 0.000000e+00 : f32
      %12 = vector.broadcast %cst_10 : f32 to vector<512x4xf32>
      %c0_11 = arith.constant 0 : index
      %c0_12 = arith.constant 0 : index
      %13 = vector.load %arg9[%c0_11, %c0_12] : memref<512x4xf32, #tpu.memory_space<vmem>>, vector<512x4xf32>
      tpu.vector_store %arg9[%c0_11, %c0_12], %12 {strides = array<i32>} : memref<512x4xf32, #tpu.memory_space<vmem>>, vector<512x4xf32>,
    } else {
    }
    %c0 = arith.constant 0 : index
    %c0_1 = arith.constant 0 : index
    %3 = vector.load %arg9[%c0, %c0_1] : memref<512x4xf32, #tpu.memory_space<vmem>>, vector<512x4xf32>
    %c0_2 = arith.constant 0 : index
    %c0_3 = arith.constant 0 : index
    %4 = vector.load %arg3[%c0_2, %c0_3] : memref<512x36xf32, #tpu.memory_space<vmem>>, vector<512x36xf32>
    %c0_4 = arith.constant 0 : index
    %c0_5 = arith.constant 0 : index
    %5 = vector.load %arg4[%c0_4, %c0_5] : memref<36x4xf32, #tpu.memory_space<vmem>>, vector<36x4xf32>
    %cst = arith.constant dense<0.000000e+00> : vector<512x4xf32>
    %6 = tpu.matmul %4, %5, %cst {dimension_numbers = #tpu.dot_dimension_numbers<[1], [0], [0], [1], [0, 0, 1, 1], [], []>} : vector<512x36xf32>, vector<36x4xf32>, vector<512x4xf32> -> vector<512x4xf32>
    %7 = arith.addf %3, %6 : vector<512x4xf32>
    %c0_6 = arith.constant 0 : index
    %c0_7 = arith.constant 0 : index
    %8 = vector.load %arg9[%c0_6, %c0_7] : memref<512x4xf32, #tpu.memory_space<vmem>>, vector<512x4xf32>
    tpu.vector_store %arg9[%c0_6, %c0_7], %7 {strides = array<i32>} : memref<512x4xf32, #tpu.memory_space<vmem>>, vector<512x4xf32>,
    %c0_i32_8 = arith.constant 0 : i32
    %9 = arith.cmpi eq, %arg2, %c0_i32_8 : i32
    %10 = arith.extui %9 : i1 to i32
    %c0_i32_9 = arith.constant 0 : i32
    %11 = arith.cmpi ne, %10, %c0_i32_9 : i32
    scf.if %11 {
      %c0_10 = arith.constant 0 : index
      %c0_11 = arith.constant 0 : index
      %12 = vector.load %arg9[%c0_10, %c0_11] : memref<512x4xf32, #tpu.memory_space<vmem>>, vector<512x4xf32>
      %c0_12 = arith.constant 0 : index
      %c0_13 = arith.constant 0 : index
      %13 = vector.load %arg5[%c0_12, %c0_13] : memref<1x4xf32, #tpu.memory_space<vmem>>, vector<1x4xf32>
      %14 = vector.broadcast %13 : vector<1x4xf32> to vector<512x4xf32>
      %15 = arith.addf %12, %14 : vector<512x4xf32>
      %c0_14 = arith.constant 0 : index
      %c0_15 = arith.constant 0 : index
      %16 = vector.load %arg6[%c0_14, %c0_15] : memref<512x1xf32, #tpu.memory_space<vmem>>, vector<512x1xf32>
      %c0_16 = arith.constant 0 : index
      %c0_17 = arith.constant 0 : index
      %17 = vector.load %arg7[%c0_16, %c0_17] : memref<1x4xf32, #tpu.memory_space<vmem>>, vector<1x4xf32>
      %18 = vector.broadcast %16 : vector<512x1xf32> to vector<512x4xf32>
      %19 = vector.broadcast %17 : vector<1x4xf32> to vector<512x4xf32>
      %20 = arith.mulf %18, %19 : vector<512x4xf32>
      %21 = arith.addf %15, %20 : vector<512x4xf32>
      %cst_18 = arith.constant 0.000000e+00 : f32
      %22 = vector.broadcast %cst_18 : f32 to vector<512x4xf32>
      %23 = arith.cmpf oge, %21, %22 : vector<512x4xf32>
      %cst_19 = arith.constant 2.000000e-01 : f32
      %24 = vector.broadcast %cst_19 : f32 to vector<512x4xf32>
      %25 = arith.mulf %24, %21 : vector<512x4xf32>
      %26 = arith.select %23, %21, %25 : vector<512x4xi1>, vector<512x4xf32>
      %c0_20 = arith.constant 0 : index
      %c0_21 = arith.constant 0 : index
      %27 = vector.load %arg8[%c0_20, %c0_21] : memref<512x4xf32, #tpu.memory_space<vmem>>, vector<512x4xf32>
      tpu.vector_store %arg8[%c0_20, %c0_21], %26 {strides = array<i32>} : memref<512x4xf32, #tpu.memory_space<vmem>>, vector<512x4xf32>,
    } else {
    }
    return
  }
  func.func @transform_0(%arg0: i32, %arg1: i32, %arg2: i32) -> (i32, i32) {
    %c0_i32 = arith.constant 0 : i32
    return %arg0, %arg2 : i32, i32
  }
  func.func @transform_1(%arg0: i32, %arg1: i32, %arg2: i32) -> (i32, i32) {
    %c0_i32 = arith.constant 0 : i32
    return %arg2, %arg1 : i32, i32
  }
  func.func @transform_2(%arg0: i32, %arg1: i32, %arg2: i32) -> (i32, i32) {
    %c0_i32 = arith.constant 0 : i32
    %c0_i32_0 = arith.constant 0 : i32
    return %c0_i32, %arg1 : i32, i32
  }
  func.func @transform_3(%arg0: i32, %arg1: i32, %arg2: i32) -> (i32, i32) {
    %c0_i32 = arith.constant 0 : i32
    %c0_i32_0 = arith.constant 0 : i32
    return %arg0, %c0_i32 : i32, i32
  }
  func.func @transform_4(%arg0: i32, %arg1: i32, %arg2: i32) -> (i32, i32) {
    %c0_i32 = arith.constant 0 : i32
    %c0_i32_0 = arith.constant 0 : i32
    return %c0_i32, %arg1 : i32, i32
  }
  func.func @transform_5(%arg0: i32, %arg1: i32, %arg2: i32) -> (i32, i32) {
    %c0_i32 = arith.constant 0 : i32
    return %arg0, %arg1 : i32, i32
  }
}

module attributes {stable_mosaic.version = 11 : i64} {
  func.func @_gemm_kernel(%arg0: i32, %arg1: i32, %arg2: i32, %arg3: memref<8x128xf32, #tpu.memory_space<vmem>>, %arg4: memref<128x16xf32, #tpu.memory_space<vmem>>, %arg5: memref<1x16xf32, #tpu.memory_space<vmem>>, %arg6: memref<8x16xf32, #tpu.memory_space<vmem>>, %arg7: memref<8x16xf32, #tpu.memory_space<vmem>>) attributes {dimension_semantics = [#tpu.dimension_semantics<parallel>, #tpu.dimension_semantics<parallel>, #tpu.dimension_semantics<arbitrary>], iteration_bounds = array<i64: 1, 1, 1>, scalar_prefetch = 0 : i64, scratch_operands = 1 : i64, tpu.core_type = #tpu.core_type<tc>, window_params = [{transform_indices = @transform_0, window_bounds = array<i64: 8, 128>}, {transform_indices = @transform_1, window_bounds = array<i64: 128, 16>}, {transform_indices = @transform_2, window_bounds = array<i64: 1, 16>}, {transform_indices = @transform_3, window_bounds = array<i64: 8, 16>}]} {
    %c0_i32 = arith.constant 0 : i32
    %0 = arith.cmpi eq, %arg2, %c0_i32 : i32
    %1 = arith.extui %0 : i1 to i32
    %c0_i32_0 = arith.constant 0 : i32
    %2 = arith.cmpi ne, %1, %c0_i32_0 : i32
    scf.if %2 {
      %cst_10 = arith.constant 0.000000e+00 : f32
      %12 = vector.broadcast %cst_10 : f32 to vector<8x16xf32>
      %c0_11 = arith.constant 0 : index
      %c0_12 = arith.constant 0 : index
      %13 = vector.load %arg7[%c0_11, %c0_12] : memref<8x16xf32, #tpu.memory_space<vmem>>, vector<8x16xf32>
      tpu.vector_store %arg7[%c0_11, %c0_12], %12 {strides = array<i32>} : memref<8x16xf32, #tpu.memory_space<vmem>>, vector<8x16xf32>,
    } else {
    }
    %c0 = arith.constant 0 : index
    %c0_1 = arith.constant 0 : index
    %3 = vector.load %arg7[%c0, %c0_1] : memref<8x16xf32, #tpu.memory_space<vmem>>, vector<8x16xf32>
    %c0_2 = arith.constant 0 : index
    %c0_3 = arith.constant 0 : index
    %4 = vector.load %arg3[%c0_2, %c0_3] : memref<8x128xf32, #tpu.memory_space<vmem>>, vector<8x128xf32>
    %c0_4 = arith.constant 0 : index
    %c0_5 = arith.constant 0 : index
    %5 = vector.load %arg4[%c0_4, %c0_5] : memref<128x16xf32, #tpu.memory_space<vmem>>, vector<128x16xf32>
    %cst = arith.constant dense<0.000000e+00> : vector<8x16xf32>
    %6 = tpu.matmul %4, %5, %cst {dimension_numbers = #tpu.dot_dimension_numbers<[1], [0], [0], [1], [0, 0, 1, 1], [], []>} : vector<8x128xf32>, vector<128x16xf32>, vector<8x16xf32> -> vector<8x16xf32>
    %7 = arith.addf %3, %6 : vector<8x16xf32>
    %c0_6 = arith.constant 0 : index
    %c0_7 = arith.constant 0 : index
    %8 = vector.load %arg7[%c0_6, %c0_7] : memref<8x16xf32, #tpu.memory_space<vmem>>, vector<8x16xf32>
    tpu.vector_store %arg7[%c0_6, %c0_7], %7 {strides = array<i32>} : memref<8x16xf32, #tpu.memory_space<vmem>>, vector<8x16xf32>,
    %c0_i32_8 = arith.constant 0 : i32
    %9 = arith.cmpi eq, %arg2, %c0_i32_8 : i32
    %10 = arith.extui %9 : i1 to i32
    %c0_i32_9 = arith.constant 0 : i32
    %11 = arith.cmpi ne, %10, %c0_i32_9 : i32
    scf.if %11 {
      %c0_10 = arith.constant 0 : index
      %c0_11 = arith.constant 0 : index
      %12 = vector.load %arg7[%c0_10, %c0_11] : memref<8x16xf32, #tpu.memory_space<vmem>>, vector<8x16xf32>
      %c0_12 = arith.constant 0 : index
      %c0_13 = arith.constant 0 : index
      %13 = vector.load %arg5[%c0_12, %c0_13] : memref<1x16xf32, #tpu.memory_space<vmem>>, vector<1x16xf32>
      %14 = vector.broadcast %13 : vector<1x16xf32> to vector<8x16xf32>
      %15 = arith.addf %12, %14 : vector<8x16xf32>
      %c0_14 = arith.constant 0 : index
      %c0_15 = arith.constant 0 : index
      %16 = vector.load %arg6[%c0_14, %c0_15] : memref<8x16xf32, #tpu.memory_space<vmem>>, vector<8x16xf32>
      tpu.vector_store %arg6[%c0_14, %c0_15], %15 {strides = array<i32>} : memref<8x16xf32, #tpu.memory_space<vmem>>, vector<8x16xf32>,
    } else {
    }
    return
  }
  func.func @transform_0(%arg0: i32, %arg1: i32, %arg2: i32) -> (i32, i32) {
    %c0_i32 = arith.constant 0 : i32
    return %arg0, %arg2 : i32, i32
  }
  func.func @transform_1(%arg0: i32, %arg1: i32, %arg2: i32) -> (i32, i32) {
    %c0_i32 = arith.constant 0 : i32
    return %arg2, %arg1 : i32, i32
  }
  func.func @transform_2(%arg0: i32, %arg1: i32, %arg2: i32) -> (i32, i32) {
    %c0_i32 = arith.constant 0 : i32
    %c0_i32_0 = arith.constant 0 : i32
    return %c0_i32, %arg1 : i32, i32
  }
  func.func @transform_3(%arg0: i32, %arg1: i32, %arg2: i32) -> (i32, i32) {
    %c0_i32 = arith.constant 0 : i32
    return %arg0, %arg1 : i32, i32
  }
}

module attributes {stable_mosaic.version = 11 : i64} {
  func.func @_in_adain_kernel(%arg0: i32, %arg1: i32, %arg2: memref<1x256x4xf32, #tpu.memory_space<vmem>>, %arg3: memref<1x1x4xf32, #tpu.memory_space<vmem>>, %arg4: memref<1x1x4xf32, #tpu.memory_space<vmem>>, %arg5: memref<1x256x4xf32, #tpu.memory_space<vmem>>) attributes {dimension_semantics = [#tpu.dimension_semantics<parallel>, #tpu.dimension_semantics<parallel>], iteration_bounds = array<i64: 2, 1>, scalar_prefetch = 0 : i64, scratch_operands = 0 : i64, tpu.core_type = #tpu.core_type<tc>, window_params = [{transform_indices = @transform_0, window_bounds = array<i64: 1, 256, 4>}, {transform_indices = @transform_1, window_bounds = array<i64: 1, 1, 4>}, {transform_indices = @transform_2, window_bounds = array<i64: 1, 1, 4>}, {transform_indices = @transform_3, window_bounds = array<i64: 1, 256, 4>}]} {
    %c0 = arith.constant 0 : index
    %c0_0 = arith.constant 0 : index
    %c0_1 = arith.constant 0 : index
    %0 = vector.load %arg2[%c0, %c0_0, %c0_1] : memref<1x256x4xf32, #tpu.memory_space<vmem>>, vector<1x256x4xf32>
    %cst = arith.constant dense<0.000000e+00> : vector<1x4xf32>
    %1 = vector.multi_reduction <add>, %0, %cst [1] : vector<1x256x4xf32> to vector<1x4xf32>
    %2 = vector.shape_cast %1 : vector<1x4xf32> to vector<1x1x4xf32>
    %cst_2 = arith.constant 3.906250e-03 : f32
    %3 = vector.broadcast %cst_2 : f32 to vector<1x1x4xf32>
    %4 = arith.mulf %2, %3 : vector<1x1x4xf32>
    %5 = arith.mulf %0, %0 : vector<1x256x4xf32>
    %cst_3 = arith.constant dense<0.000000e+00> : vector<1x4xf32>
    %6 = vector.multi_reduction <add>, %5, %cst_3 [1] : vector<1x256x4xf32> to vector<1x4xf32>
    %7 = vector.shape_cast %6 : vector<1x4xf32> to vector<1x1x4xf32>
    %cst_4 = arith.constant 3.906250e-03 : f32
    %8 = vector.broadcast %cst_4 : f32 to vector<1x1x4xf32>
    %9 = arith.mulf %7, %8 : vector<1x1x4xf32>
    %10 = arith.mulf %4, %4 : vector<1x1x4xf32>
    %11 = arith.subf %9, %10 : vector<1x1x4xf32>
    %cst_5 = arith.constant 0.000000e+00 : f32
    %12 = vector.broadcast %cst_5 : f32 to vector<1x1x4xf32>
    %13 = arith.maximumf %11, %12 : vector<1x1x4xf32>
    %14 = vector.broadcast %4 : vector<1x1x4xf32> to vector<1x256x4xf32>
    %15 = arith.subf %0, %14 : vector<1x256x4xf32>
    %cst_6 = arith.constant 9.99999974E-6 : f32
    %16 = vector.broadcast %cst_6 : f32 to vector<1x1x4xf32>
    %17 = arith.addf %13, %16 : vector<1x1x4xf32>
    %18 = math.rsqrt %17 : vector<1x1x4xf32>
    %19 = vector.broadcast %18 : vector<1x1x4xf32> to vector<1x256x4xf32>
    %20 = arith.mulf %15, %19 : vector<1x256x4xf32>
    %c0_7 = arith.constant 0 : index
    %c0_8 = arith.constant 0 : index
    %c0_9 = arith.constant 0 : index
    %21 = vector.load %arg3[%c0_7, %c0_8, %c0_9] : memref<1x1x4xf32, #tpu.memory_space<vmem>>, vector<1x1x4xf32>
    %22 = vector.broadcast %21 : vector<1x1x4xf32> to vector<1x256x4xf32>
    %23 = arith.mulf %22, %20 : vector<1x256x4xf32>
    %c0_10 = arith.constant 0 : index
    %c0_11 = arith.constant 0 : index
    %c0_12 = arith.constant 0 : index
    %24 = vector.load %arg4[%c0_10, %c0_11, %c0_12] : memref<1x1x4xf32, #tpu.memory_space<vmem>>, vector<1x1x4xf32>
    %25 = vector.broadcast %24 : vector<1x1x4xf32> to vector<1x256x4xf32>
    %26 = arith.addf %23, %25 : vector<1x256x4xf32>
    %c0_13 = arith.constant 0 : index
    %c0_14 = arith.constant 0 : index
    %c0_15 = arith.constant 0 : index
    %27 = vector.load %arg5[%c0_13, %c0_14, %c0_15] : memref<1x256x4xf32, #tpu.memory_space<vmem>>, vector<1x256x4xf32>
    tpu.vector_store %arg5[%c0_13, %c0_14, %c0_15], %26 {strides = array<i32>} : memref<1x256x4xf32, #tpu.memory_space<vmem>>, vector<1x256x4xf32>,
    return
  }
  func.func @transform_0(%arg0: i32, %arg1: i32) -> (i32, i32, i32) {
    %c0_i32 = arith.constant 0 : i32
    %c0_i32_0 = arith.constant 0 : i32
    return %arg0, %c0_i32, %arg1 : i32, i32, i32
  }
  func.func @transform_1(%arg0: i32, %arg1: i32) -> (i32, i32, i32) {
    %c0_i32 = arith.constant 0 : i32
    %c0_i32_0 = arith.constant 0 : i32
    return %arg0, %c0_i32, %arg1 : i32, i32, i32
  }
  func.func @transform_2(%arg0: i32, %arg1: i32) -> (i32, i32, i32) {
    %c0_i32 = arith.constant 0 : i32
    %c0_i32_0 = arith.constant 0 : i32
    return %arg0, %c0_i32, %arg1 : i32, i32, i32
  }
  func.func @transform_3(%arg0: i32, %arg1: i32) -> (i32, i32, i32) {
    %c0_i32 = arith.constant 0 : i32
    %c0_i32_0 = arith.constant 0 : i32
    return %arg0, %c0_i32, %arg1 : i32, i32, i32
  }
}

</mosaic_0001>

<llo_original>
// kernel: styled_conv_block.5
$region0: #{styled_conv_block.5}
  #allocation0 [shape = 'u32[]', space=smem, size = 0x4, offset = 0x4, fixed_abs, tag = 'smem constant byte address 0x4 - core index']
  #allocation1 [shape = 'u32[144,128]{1,0:T(1,128)}', space=vmem, size = 0x12000, scoped, tag = 'internal scratch']
  #allocation2 [shape = 'f32[8,16]{1,0:T(8,128)}', space=vmem, size = 0x1000, scoped, tag = 'scratch operand']
  %s0 = inlined_call_operand.vmem [shape: f32[8,128], index: 0, kind: input, shape index: {}]
  %s1 = inlined_call_operand.vmem [shape: f32[128,16], index: 1, kind: input, shape index: {}]
  %s2 = inlined_call_operand.vmem [shape: f32[1,16], index: 2, kind: input, shape index: {}]
  %s3 = inlined_call_operand.vmem [shape: f32[8,16], index: 3, kind: output, shape index: {}]
  %s4 = sld [smem:[#allocation0]]
  $region30: #{styled_conv_block.5} parent=0
    _
  %s6 = ssub.s32 1, %s4
  %s7 = scalar_select 0, %s6, %s4
  // Predicated region
  $region2: #{styled_conv_block.5} parent=0 // pred_check
    _
  $region3: #{styled_conv_block.5} parent=0 // pred_check_branch
    %9 = sbr.rel (0) target = $region5
  $region4: #{styled_conv_block.5} parent=0 // pred_region
    _
  $region5: #{styled_conv_block.5} parent=0 // pred_fallthru
    _
  // Predicated region
  $region6: #{styled_conv_block.5} parent=0 // pred_check
    _
  $region7: #{styled_conv_block.5} parent=0 // pred_check_branch
    %11 = sbr.rel (0) target = $region9
  $region8: #{styled_conv_block.5} parent=0 // pred_region
    _
  $region9: #{styled_conv_block.5} parent=0 // pred_fallthru
    _
  // Predicated region
  $region10: #{styled_conv_block.5} parent=0 // pred_check
    _
  $region11: #{styled_conv_block.5} parent=0 // pred_check_branch
    %13 = sbr.rel (0) target = $region13
  $region12: #{styled_conv_block.5} parent=0 // pred_region
    _
  $region13: #{styled_conv_block.5} parent=0 // pred_fallthru
    _
  %p14 = scmp.eq.s32.totalorder 0, 0
  // Predicated region
  $region14: #{styled_conv_block.5} parent=0 // pred_check
    %p15 = pneg %p14
  $region15: #{styled_conv_block.5} parent=0 // pred_check_branch
    %17 = sbr.rel (%p15) target = $region17
  $region16: #{styled_conv_block.5} parent=0 // pred_region
    %vm18 = vcmask 130048
    %19 = vst.msk [vmem:[#allocation2] sm:$0xff] %vm18, 0.0
  $region17: #{styled_conv_block.5} parent=0 // pred_fallthru
    _
  %v20 = vld [vmem:[#allocation2] sm:$0xff]
  %v21 = vld [vmem:[%s0] sm:$0xff]
  %v22 = vld [vmem:[%s1] sm:$0xff]
  %v23 = vld [vmem:[%s1 + $0x8] sm:$0xff]
  %v24 = vld [vmem:[%s1 + $0x10] sm:$0xff]
  %v25 = vld [vmem:[%s1 + $0x18] sm:$0xff]
  %v26 = vld [vmem:[%s1 + $0x20] sm:$0xff]
  %v27 = vld [vmem:[%s1 + $0x28] sm:$0xff]
  %v28 = vld [vmem:[%s1 + $0x30] sm:$0xff]
  %v29 = vld [vmem:[%s1 + $0x38] sm:$0xff]
  %v30 = vld [vmem:[%s1 + $0x40] sm:$0xff]
  %v31 = vld [vmem:[%s1 + $0x48] sm:$0xff]
  %v32 = vld [vmem:[%s1 + $0x50] sm:$0xff]
  %v33 = vld [vmem:[%s1 + $0x58] sm:$0xff]
  %v34 = vld [vmem:[%s1 + $0x60] sm:$0xff]
  %v35 = vld [vmem:[%s1 + $0x68] sm:$0xff]
  %v36 = vld [vmem:[%s1 + $0x70] sm:$0xff]
  %v37 = vld [vmem:[%s1 + $0x78] sm:$0xff]
  %38 = vmatprep.subr.mxu0 0.0
  %39 = vmatpush1.msra.mxu0 %v37
  %40 = vmatprep.subr.mxu0 0.0
  %41 = vmatpush1.msra.mxu0 %v36
  %42 = vmatprep.subr.mxu0 0.0
  %43 = vmatpush1.msra.mxu0 %v35
  %44 = vmatprep.subr.mxu0 0.0
  %45 = vmatpush1.msra.mxu0 %v34
  %46 = vmatprep.subr.mxu0 0.0
  %47 = vmatpush1.msra.mxu0 %v33
  %48 = vmatprep.subr.mxu0 0.0
  %49 = vmatpush1.msra.mxu0 %v32
  %50 = vmatprep.subr.mxu0 0.0
  %51 = vmatpush1.msra.mxu0 %v31
  %52 = vmatprep.subr.mxu0 0.0
  %53 = vmatpush1.msra.mxu0 %v30
  %54 = vmatprep.subr.mxu0 0.0
  %55 = vmatpush1.msra.mxu0 %v29
  %56 = vmatprep.subr.mxu0 0.0
  %57 = vmatpush1.msra.mxu0 %v28
  %58 = vmatprep.subr.mxu0 0.0
  %59 = vmatpush1.msra.mxu0 %v27
  %60 = vmatprep.subr.mxu0 0.0
  %61 = vmatpush1.msra.mxu0 %v26
  %62 = vmatprep.subr.mxu0 0.0
  %63 = vmatpush1.msra.mxu0 %v25
  %64 = vmatprep.subr.mxu0 0.0
  %65 = vmatpush1.msra.mxu0 %v24
  %66 = vmatprep.subr.mxu0 0.0
  %67 = vmatpush1.msra.mxu0 %v23
  %68 = vmatprep.subr.mxu0 0.0
  %69 = vmatpush1.msra.mxu0 %v22
  %70 = vmatprep.subr.mxu0 0.0
  %71 = vmatpush2.msra.mxu0 0.0
  %72 = vmatprep.subr.mxu0 0.0
  %73 = vmatpush2.msra.mxu0 0.0
  %74 = vmatprep.subr.mxu0 0.0
  %75 = vmatpush2.msra.mxu0 0.0
  %76 = vmatprep.subr.mxu0 0.0
  %77 = vmatpush2.msra.mxu0 0.0
  %78 = vmatprep.subr.mxu0 0.0
  %79 = vmatpush2.msra.mxu0 0.0
  %80 = vmatprep.subr.mxu0 0.0
  %81 = vmatpush2.msra.mxu0 0.0
  %82 = vmatprep.subr.mxu0 0.0
  %83 = vmatpush2.msra.mxu0 0.0
  %84 = vmatprep.subr.mxu0 0.0
  %85 = vmatpush2.msra.mxu0 0.0
  %86 = vmatprep.subr.mxu0 0.0
  %87 = vmatpush2.msra.mxu0 0.0
  %88 = vmatprep.subr.mxu0 0.0
  %89 = vmatpush2.msra.mxu0 0.0
  %90 = vmatprep.subr.mxu0 0.0
  %91 = vmatpush2.msra.mxu0 0.0
  %92 = vmatprep.subr.mxu0 0.0
  %93 = vmatpush2.msra.mxu0 0.0
  %94 = vmatprep.subr.mxu0 0.0
  %95 = vmatpush2.msra.mxu0 0.0
  %96 = vmatprep.subr.mxu0 0.0
  %97 = vmatpush2.msra.mxu0 0.0
  %98 = vmatprep.subr.mxu0 0.0
  %99 = vmatpush2.msra.mxu0 0.0
  %100 = vmatprep.subr.mxu0 0.0
  %101 = vmatpush2.msra.mxu0 0.0
  %102 = vmatprep.mubr.f32.mxu0 0.0
  %103 = vmatmul.mubr.f32.gmra.mxu0 %v21
  %v104 = vpop.f32.mrf.mxu0
  %v105 = vadd.f32 0.0, %v104
  %v106 = vpop.f32.mrf.mxu0
  %107 = vdwg.mxu0
  %v108 = vadd.f32 %v20, %v105
  %vm109 = vcmask 130048
  %110 = vst.msk [vmem:[#allocation2] sm:$0xff] %vm109, %v108
  // Predicated region
  $region18: #{styled_conv_block.5} parent=0 // pred_check
    %p111 = pneg %p14
  $region19: #{styled_conv_block.5} parent=0 // pred_check_branch
    %113 = sbr.rel (%p111) target = $region21
  $region20: #{styled_conv_block.5} parent=0 // pred_region
    %v114 = vld [vmem:[#allocation2] sm:$0xff]
    %v115 = vld [vmem:[%s2] sm:$0x1]
    %v117 = vlaneseq
    %v118 = vshrl.u32 %v117, 7
    %v119 = vsub.s32 0, %v118
    %v120 = vrot.slane %v115, %v119
    %v122 = vadd.f32 %v114, %v120
    %123 = vst.msk [vmem:[%s3] sm:$0xff] %vm109, %v122
  $region21: #{styled_conv_block.5} parent=0 // pred_fallthru
    _
  // Predicated region
  $region22: #{styled_conv_block.5} parent=0 // pred_check
    _
  $region23: #{styled_conv_block.5} parent=0 // pred_check_branch
    %125 = sbr.rel (0) target = $region25
  $region24: #{styled_conv_block.5} parent=0 // pred_region
    _
  $region25: #{styled_conv_block.5} parent=0 // pred_fallthru
    _
  // Predicated region
  $region26: #{styled_conv_block.5} parent=0 // pred_check
    _
  $region27: #{styled_conv_block.5} parent=0 // pred_check_branch
    %127 = sbr.rel (0) target = $region29
  $region28: #{styled_conv_block.5} parent=0 // pred_region
    _
  $region29: #{styled_conv_block.5} parent=0 // pred_fallthru
    _

// kernel: styled_conv_block.7
$region0: #{styled_conv_block.7}
  #allocation0 [shape = 'u32[]', space=smem, size = 0x4, offset = 0x4, fixed_abs, tag = 'smem constant byte address 0x4 - core index']
  #allocation1 [shape = 'u32[144,128]{1,0:T(1,128)}', space=vmem, size = 0x12000, scoped, tag = 'internal scratch']
  %s0 = inlined_call_operand.vmem [shape: f32[2,256,4], index: 0, kind: input, shape index: {}]
  %s1 = inlined_call_operand.vmem [shape: f32[2,1,4], index: 1, kind: input, shape index: {}]
  %s2 = inlined_call_operand.vmem [shape: f32[2,1,4], index: 2, kind: input, shape index: {}]
  %s3 = inlined_call_operand.vmem [shape: f32[2,256,4], index: 3, kind: output, shape index: {}]
  %s4 = sld [smem:[#allocation0]]
  $region45: #{styled_conv_block.7} parent=0
    _
  %s6 = ssub.s32 1, %s4
  %s7 = scalar_select 0, %s6, %s4
  loop: start=0, step=1, limit=4
  $region2: #{styled_conv_block.7} parent=0 // loop_pre_header
    _
  $region3: #{styled_conv_block.7} parent=0 // loop_header
    %s9 = sphi 0, %s13
    %p10 = scmp.ge.s32.totalorder %s9, 4
    %s16 = sphi 0, %s28
    %s17 = sphi 0, %s24
    %s18 = sphi 0, %s16
    %s19 = sphi 0, %s17
    %s20 = sphi 0, %s18
    %s21 = sphi 0, %s19
    %s33 = sphi 0, %s35
    %s36 = sphi 0, %s33
    %s37 = sphi 0, %s36
    %s53 = sphi 0, %s37
    %s61 = sphi 0, %s63
    %s64 = sphi 0, %s61
    %s65 = sphi 0, %s64
    %s81 = sphi 0, %s65
    %s89 = sphi 0, %s91
    %s92 = sphi 0, %s89
    %s93 = sphi 0, %s92
    %s109 = sphi 0, %s93
    %s117 = sphi 0, %s119
    %s120 = sphi 0, %s117
    %s121 = sphi 0, %s120
    %s137 = sphi 0, %s121
  $region4: #{styled_conv_block.7} parent=0 // loop_header_branch
    %12 = sbr.rel (%p10) target = $region8
  $region5: #{styled_conv_block.7} parent=0 // loop_body
    %s14 = ssub.s32 %s9, 1
    %s15 = ssub.s32 %s9, 2
    %s22 = sadd.s32 1, %s17
    %p23 = scmp.ge.s32.totalorder %s22, 1
    %s24 = scalar_select %p23, 0, %s22
    %s25 = sadd.s32 1, %s16
    %s26 = scalar_select %p23, %s25, %s16
    %p27 = scmp.ge.s32.totalorder %s26, 2
    %s28 = scalar_select %p27, 0, %s26
    %s29 = ssub.s32 %s16, %s28
    %s30 = ssub.s32 %s17, %s24
    %s31 = sor.u32 %s29, %s30
    %p32 = scmp.eq.s32.totalorder %s31, 0
    %s34 = sadd.s32 %s33, 1
    %s35 = scalar_select %p32, %s33, %s34
    %p38 = pneg %p32
    %p39 = scmp.eq.s32.totalorder %s9, 1
    %p40 = por %p38, %p39
    %p41 = scmp.ne.s32.totalorder %s33, %s36
    %p42 = scmp.eq.s32.totalorder %s9, 0
    %p43 = por %p41, %p42
    %p44 = scmp.ne.s32.totalorder %s33, %s36
    %p45 = scmp.eq.s32.totalorder %s14, 1
    %p46 = por %p44, %p45
    %p47 = scmp.ne.s32.totalorder %s36, %s37
    %p48 = scmp.eq.s32.totalorder %s14, 0
    %p49 = por %p47, %p48
    %p50 = scmp.ne.s32.totalorder %s36, %s37
    %p51 = scmp.eq.s32.totalorder %s15, 1
    %p52 = por %p50, %p51
    %p54 = scmp.ne.s32.totalorder %s37, %s53
    %p55 = scmp.eq.s32.totalorder %s15, 0
    %p56 = por %p54, %p55
    %s57 = ssub.s32 %s16, %s28
    %s58 = ssub.s32 %s17, %s24
    %s59 = sor.u32 %s57, %s58
    %p60 = scmp.eq.s32.totalorder %s59, 0
    %s62 = sadd.s32 %s61, 1
    %s63 = scalar_select %p60, %s61, %s62
    %p66 = pneg %p60
    %p67 = scmp.eq.s32.totalorder %s9, 1
    %p68 = por %p66, %p67
    %p69 = scmp.ne.s32.totalorder %s61, %s64
    %p70 = scmp.eq.s32.totalorder %s9, 0
    %p71 = por %p69, %p70
    %p72 = scmp.ne.s32.totalorder %s61, %s64
    %p73 = scmp.eq.s32.totalorder %s14, 1
    %p74 = por %p72, %p73
    %p75 = scmp.ne.s32.totalorder %s64, %s65
    %p76 = scmp.eq.s32.totalorder %s14, 0
    %p77 = por %p75, %p76
    %p78 = scmp.ne.s32.totalorder %s64, %s65
    %p79 = scmp.eq.s32.totalorder %s15, 1
    %p80 = por %p78, %p79
    %p82 = scmp.ne.s32.totalorder %s65, %s81
    %p83 = scmp.eq.s32.totalorder %s15, 0
    %p84 = por %p82, %p83
    %s85 = ssub.s32 %s16, %s28
    %s86 = ssub.s32 %s17, %s24
    %s87 = sor.u32 %s85, %s86
    %p88 = scmp.eq.s32.totalorder %s87, 0
    %s90 = sadd.s32 %s89, 1
    %s91 = scalar_select %p88, %s89, %s90
    %p94 = pneg %p88
    %p95 = scmp.eq.s32.totalorder %s9, 1
    %p96 = por %p94, %p95
    %p97 = scmp.ne.s32.totalorder %s89, %s92
    %p98 = scmp.eq.s32.totalorder %s9, 0
    %p99 = por %p97, %p98
    %p100 = scmp.ne.s32.totalorder %s89, %s92
    %p101 = scmp.eq.s32.totalorder %s14, 1
    %p102 = por %p100, %p101
    %p103 = scmp.ne.s32.totalorder %s92, %s93
    %p104 = scmp.eq.s32.totalorder %s14, 0
    %p105 = por %p103, %p104
    %p106 = scmp.ne.s32.totalorder %s92, %s93
    %p107 = scmp.eq.s32.totalorder %s15, 1
    %p108 = por %p106, %p107
    %p110 = scmp.ne.s32.totalorder %s93, %s109
    %p111 = scmp.eq.s32.totalorder %s15, 0
    %p112 = por %p110, %p111
    %s113 = ssub.s32 %s16, %s28
    %s114 = ssub.s32 %s17, %s24
    %s115 = sor.u32 %s113, %s114
    %p116 = scmp.eq.s32.totalorder %s115, 0
    %s118 = sadd.s32 %s117, 1
    %s119 = scalar_select %p116, %s117, %s118
    %p122 = pneg %p116
    %p123 = scmp.eq.s32.totalorder %s9, 1
    %p124 = por %p122, %p123
    %p125 = scmp.ne.s32.totalorder %s117, %s120
    %p126 = scmp.eq.s32.totalorder %s9, 0
    %p127 = por %p125, %p126
    %p128 = scmp.ne.s32.totalorder %s117, %s120
    %p129 = scmp.eq.s32.totalorder %s14, 1
    %p130 = por %p128, %p129
    %p131 = scmp.ne.s32.totalorder %s120, %s121
    %p132 = scmp.eq.s32.totalorder %s14, 0
    %p133 = por %p131, %p132
    %p134 = scmp.ne.s32.totalorder %s120, %s121
    %p135 = scmp.eq.s32.totalorder %s15, 1
    %p136 = por %p134, %p135
    %p138 = scmp.ne.s32.totalorder %s121, %s137
    %p139 = scmp.eq.s32.totalorder %s15, 0
    %p140 = por %p138, %p139
    %p141 = scmp.le.s32.totalorder 1, %s9
    %p142 = scmp.lt.s32.totalorder %s9, 3
    %p143 = pnand %p141, %p142
    %p144 = pneg %p143
    // Predicated region
    $region9: #{styled_conv_block.7} parent=5 // pred_check
      _
    $region10: #{styled_conv_block.7} parent=5 // pred_check_branch
      %146 = sbr.rel (%p143) target = $region12
    $region11: #{styled_conv_block.7} parent=5 // pred_region
      %s147 = ssub.s32 %s9, 1
    $region12: #{styled_conv_block.7} parent=5 // pred_fallthru
      _
    %p148 = scmp.lt.s32.totalorder %s9, 2
    // Predicated region
    $region13: #{styled_conv_block.7} parent=5 // pred_check
      %p149 = pneg %p148
    $region14: #{styled_conv_block.7} parent=5 // pred_check_branch
      %151 = sbr.rel (%p149) target = $region16
    $region15: #{styled_conv_block.7} parent=5 // pred_region
      // Predicated region
      $region17: #{styled_conv_block.7} parent=15 // pred_check
        %p152 = pneg %p43
      $region18: #{styled_conv_block.7} parent=15 // pred_check_branch
        %154 = sbr.rel (%p152) target = $region20
      $region19: #{styled_conv_block.7} parent=15 // pred_region
        %p155 = scmp.lt.s32.totalorder %s16, 1
        %s156 = scalar_select %p155, %s16, 1
        %p157 = scmp.lt.s32.totalorder %s17, 0
        %s158 = scalar_select %p157, %s17, 0
        %s159 = smul.addr %s156, 32
        %s160 = sadd.s32 %s158, %s159
        %s161 = smul.addr %s160, 8
        %s162 = scalar_lea.vmem %s0, %s161
      $region20: #{styled_conv_block.7} parent=15 // pred_fallthru
        _
      // Predicated region
      $region21: #{styled_conv_block.7} parent=15 // pred_check
        %p163 = pneg %p71
      $region22: #{styled_conv_block.7} parent=15 // pred_check_branch
        %165 = sbr.rel (%p163) target = $region24
      $region23: #{styled_conv_block.7} parent=15 // pred_region
        %p166 = scmp.lt.s32.totalorder %s16, 1
        %s167 = scalar_select %p166, %s16, 1
        %p168 = scmp.lt.s32.totalorder %s17, 0
        %s169 = scalar_select %p168, %s17, 0
        %s170 = sadd.s32 %s169, %s167
        %s171 = scalar_lea.vmem %s1, %s170
      $region24: #{styled_conv_block.7} parent=15 // pred_fallthru
        _
      // Predicated region
      $region25: #{styled_conv_block.7} parent=15 // pred_check
        %p172 = pneg %p99
      $region26: #{styled_conv_block.7} parent=15 // pred_check_branch
        %174 = sbr.rel (%p172) target = $region28
      $region27: #{styled_conv_block.7} parent=15 // pred_region
        %p175 = scmp.lt.s32.totalorder %s16, 1
        %s176 = scalar_select %p175, %s16, 1
        %p177 = scmp.lt.s32.totalorder %s17, 0
        %s178 = scalar_select %p177, %s17, 0
        %s179 = sadd.s32 %s178, %s176
        %s180 = scalar_lea.vmem %s2, %s179
      $region28: #{styled_conv_block.7} parent=15 // pred_fallthru
        _
    $region16: #{styled_conv_block.7} parent=5 // pred_fallthru
      _
    %p181 = scmp.le.s32.totalorder 1, %s9
    %p182 = scmp.lt.s32.totalorder %s9, 3
    %p183 = pnand %p181, %p182
    %p184 = pneg %p183
    // Predicated region
    $region29: #{styled_conv_block.7} parent=5 // pred_check
      _
    $region30: #{styled_conv_block.7} parent=5 // pred_check_branch
      %186 = sbr.rel (%p183) target = $region32
    $region31: #{styled_conv_block.7} parent=5 // pred_region
      %s187 = ssub.s32 %s9, 1
      %p188 = scmp.lt.s32.totalorder %s18, 1
      %s189 = scalar_select %p188, %s18, 1
      %p190 = scmp.lt.s32.totalorder %s19, 0
      %s191 = scalar_select %p190, %s19, 0
      %s192 = smul.addr %s189, 32
      %s193 = sadd.s32 %s191, %s192
      %s194 = smul.addr %s193, 8
      %s195 = scalar_lea.vmem %s0, %s194
      %p196 = pneg %p49
      %p197 = pneg %p46
      %p198 = scmp.lt.s32.totalorder %s18, 1
      %s199 = scalar_select %p198, %s18, 1
      %p200 = scmp.lt.s32.totalorder %s19, 0
      %s201 = scalar_select %p200, %s19, 0
      %s202 = sadd.s32 %s201, %s199
      %s203 = scalar_lea.vmem %s1, %s202
      %p204 = pneg %p77
      %p205 = pneg %p74
      %p206 = scmp.lt.s32.totalorder %s18, 1
      %s207 = scalar_select %p206, %s18, 1
      %p208 = scmp.lt.s32.totalorder %s19, 0
      %s209 = scalar_select %p208, %s19, 0
      %s210 = sadd.s32 %s209, %s207
      %s211 = scalar_lea.vmem %s2, %s210
      %p212 = pneg %p105
      %p213 = pneg %p102
      %p214 = pneg %p133
      %p215 = pneg %p130
      %p216 = scmp.lt.s32.totalorder %s18, 1
      %s217 = scalar_select %p216, %s18, 1
      %p218 = scmp.lt.s32.totalorder %s19, 0
      %s219 = scalar_select %p218, %s19, 0
      %s220 = smul.addr %s217, 32
      %s221 = sadd.s32 %s219, %s220
      %s222 = smul.addr %s221, 8
      %s223 = scalar_lea.vmem %s3, %s222
      %p224 = scmp.lt.s32.totalorder %s18, 1
      %s225 = scalar_select %p224, %s18, 1
      %p226 = scmp.lt.s32.totalorder %s19, 0
      %s227 = scalar_select %p226, %s19, 0
      %s228 = smul.addr %s225, 32
      %s229 = sadd.s32 %s227, %s228
      %s230 = smul.addr %s229, 8
      %s231 = scalar_lea.vmem %s0, %s230
      %p232 = scmp.lt.s32.totalorder %s18, 1
      %s233 = scalar_select %p232, %s18, 1
      %p234 = scmp.lt.s32.totalorder %s19, 0
      %s235 = scalar_select %p234, %s19, 0
      %s236 = sadd.s32 %s235, %s233
      %s237 = scalar_lea.vmem %s1, %s236
      %p238 = scmp.lt.s32.totalorder %s18, 1
      %s239 = scalar_select %p238, %s18, 1
      %p240 = scmp.lt.s32.totalorder %s19, 0
      %s241 = scalar_select %p240, %s19, 0
      %s242 = sadd.s32 %s241, %s239
      %s243 = scalar_lea.vmem %s2, %s242
      %p244 = scmp.lt.s32.totalorder %s18, 1
      %s245 = scalar_select %p244, %s18, 1
      %p246 = scmp.lt.s32.totalorder %s19, 0
      %s247 = scalar_select %p246, %s19, 0
      %s248 = smul.addr %s245, 32
      %s249 = sadd.s32 %s247, %s248
      %s250 = smul.addr %s249, 8
      %s251 = scalar_lea.vmem %s3, %s250
      %v252 = vld [vmem:[%s231] sm:$0xff]
      %v253 = vld [vmem:[%s231 + $0x8] sm:$0xff]
      %v254 = vld [vmem:[%s231 + $0x10] sm:$0xff]
      %v255 = vld [vmem:[%s231 + $0x18] sm:$0xff]
      %v256 = vld [vmem:[%s231 + $0x20] sm:$0xff]
      %v257 = vld [vmem:[%s231 + $0x28] sm:$0xff]
      %v258 = vld [vmem:[%s231 + $0x30] sm:$0xff]
      %v259 = vld [vmem:[%s231 + $0x38] sm:$0xff]
      %v260 = vld [vmem:[%s231 + $0x40] sm:$0xff]
      %v261 = vld [vmem:[%s231 + $0x48] sm:$0xff]
      %v262 = vld [vmem:[%s231 + $0x50] sm:$0xff]
      %v263 = vld [vmem:[%s231 + $0x58] sm:$0xff]
      %v264 = vld [vmem:[%s231 + $0x60] sm:$0xff]
      %v265 = vld [vmem:[%s231 + $0x68] sm:$0xff]
      %v266 = vld [vmem:[%s231 + $0x70] sm:$0xff]
      %v267 = vld [vmem:[%s231 + $0x78] sm:$0xff]
      %v268 = vld [vmem:[%s231 + $0x80] sm:$0xff]
      %v269 = vld [vmem:[%s231 + $0x88] sm:$0xff]
      %v270 = vld [vmem:[%s231 + $0x90] sm:$0xff]
      %v271 = vld [vmem:[%s231 + $0x98] sm:$0xff]
      %v272 = vld [vmem:[%s231 + $0xa0] sm:$0xff]
      %v273 = vld [vmem:[%s231 + $0xa8] sm:$0xff]
      %v274 = vld [vmem:[%s231 + $0xb0] sm:$0xff]
      %v275 = vld [vmem:[%s231 + $0xb8] sm:$0xff]
      %v276 = vld [vmem:[%s231 + $0xc0] sm:$0xff]
      %v277 = vld [vmem:[%s231 + $0xc8] sm:$0xff]
      %v278 = vld [vmem:[%s231 + $0xd0] sm:$0xff]
      %v279 = vld [vmem:[%s231 + $0xd8] sm:$0xff]
      %v280 = vld [vmem:[%s231 + $0xe0] sm:$0xff]
      %v281 = vld [vmem:[%s231 + $0xe8] sm:$0xff]
      %v282 = vld [vmem:[%s231 + $0xf0] sm:$0xff]
      %v283 = vld [vmem:[%s231 + $0xf8] sm:$0xff]
      %vm284 = vcmask 31744
      %v285 = vsel %vm284, %v252, 0.0
      %v286 = vsel %vm284, %v253, 0.0
      %v287 = vadd.f32 %v285, %v286
      %v288 = vsel %vm284, %v254, 0.0
      %v289 = vadd.f32 %v287, %v288
      %v290 = vsel %vm284, %v255, 0.0
      %v291 = vadd.f32 %v289, %v290
      %v292 = vsel %vm284, %v256, 0.0
      %v293 = vadd.f32 %v291, %v292
      %v294 = vsel %vm284, %v257, 0.0
      %v295 = vadd.f32 %v293, %v294
      %v296 = vsel %vm284, %v258, 0.0
      %v297 = vadd.f32 %v295, %v296
      %v298 = vsel %vm284, %v259, 0.0
      %v299 = vadd.f32 %v297, %v298
      %v300 = vsel %vm284, %v260, 0.0
      %v301 = vadd.f32 %v299, %v300
      %v302 = vsel %vm284, %v261, 0.0
      %v303 = vadd.f32 %v301, %v302
      %v304 = vsel %vm284, %v262, 0.0
      %v305 = vadd.f32 %v303, %v304
      %v306 = vsel %vm284, %v263, 0.0
      %v307 = vadd.f32 %v305, %v306
      %v308 = vsel %vm284, %v264, 0.0
      %v309 = vadd.f32 %v307, %v308
      %v310 = vsel %vm284, %v265, 0.0
      %v311 = vadd.f32 %v309, %v310
      %v312 = vsel %vm284, %v266, 0.0
      %v313 = vadd.f32 %v311, %v312
      %v314 = vsel %vm284, %v267, 0.0
      %v315 = vadd.f32 %v313, %v314
      %v316 = vsel %vm284, %v268, 0.0
      %v317 = vadd.f32 %v315, %v316
      %v318 = vsel %vm284, %v269, 0.0
      %v319 = vadd.f32 %v317, %v318
      %v320 = vsel %vm284, %v270, 0.0
      %v321 = vadd.f32 %v319, %v320
      %v322 = vsel %vm284, %v271, 0.0
      %v323 = vadd.f32 %v321, %v322
      %v324 = vsel %vm284, %v272, 0.0
      %v325 = vadd.f32 %v323, %v324
      %v326 = vsel %vm284, %v273, 0.0
      %v327 = vadd.f32 %v325, %v326
      %v328 = vsel %vm284, %v274, 0.0
      %v329 = vadd.f32 %v327, %v328
      %v330 = vsel %vm284, %v275, 0.0
      %v331 = vadd.f32 %v329, %v330
      %v332 = vsel %vm284, %v276, 0.0
      %v333 = vadd.f32 %v331, %v332
      %v334 = vsel %vm284, %v277, 0.0
      %v335 = vadd.f32 %v333, %v334
      %v336 = vsel %vm284, %v278, 0.0
      %v337 = vadd.f32 %v335, %v336
      %v338 = vsel %vm284, %v279, 0.0
      %v339 = vadd.f32 %v337, %v338
      %v340 = vsel %vm284, %v280, 0.0
      %v341 = vadd.f32 %v339, %v340
      %v342 = vsel %vm284, %v281, 0.0
      %v343 = vadd.f32 %v341, %v342
      %v344 = vsel %vm284, %v282, 0.0
      %v345 = vadd.f32 %v343, %v344
      %v346 = vsel %vm284, %v283, 0.0
      %v347 = vadd.f32 %v345, %v346
      %v348 = vrot.slane %v347, 4
      %v349 = vadd.f32 %v347, %v348
      %v350 = vrot.slane %v349, 2
      %v351 = vadd.f32 %v349, %v350
      %v352 = vrot.slane %v351, 1
      %v353 = vadd.f32 %v351, %v352
      %v354 = vmul.f32 %v353, 0.00390625
      %v355 = vmul.f32 %v252, %v252
      %v356 = vmul.f32 %v253, %v253
      %v357 = vmul.f32 %v254, %v254
      %v358 = vmul.f32 %v255, %v255
      %v359 = vmul.f32 %v256, %v256
      %v360 = vmul.f32 %v257, %v257
      %v361 = vmul.f32 %v258, %v258
      %v362 = vmul.f32 %v259, %v259
      %v363 = vmul.f32 %v260, %v260
      %v364 = vmul.f32 %v261, %v261
      %v365 = vmul.f32 %v262, %v262
      %v366 = vmul.f32 %v263, %v263
      %v367 = vmul.f32 %v264, %v264
      %v368 = vmul.f32 %v265, %v265
      %v369 = vmul.f32 %v266, %v266
      %v370 = vmul.f32 %v267, %v267
      %v371 = vmul.f32 %v268, %v268
      %v372 = vmul.f32 %v269, %v269
      %v373 = vmul.f32 %v270, %v270
      %v374 = vmul.f32 %v271, %v271
      %v375 = vmul.f32 %v272, %v272
      %v376 = vmul.f32 %v273, %v273
      %v377 = vmul.f32 %v274, %v274
      %v378 = vmul.f32 %v275, %v275
      %v379 = vmul.f32 %v276, %v276
      %v380 = vmul.f32 %v277, %v277
      %v381 = vmul.f32 %v278, %v278
      %v382 = vmul.f32 %v279, %v279
      %v383 = vmul.f32 %v280, %v280
      %v384 = vmul.f32 %v281, %v281
      %v385 = vmul.f32 %v282, %v282
      %v386 = vmul.f32 %v283, %v283
      %v387 = vsel %vm284, %v355, 0.0
      %v388 = vsel %vm284, %v356, 0.0
      %v389 = vadd.f32 %v387, %v388
      %v390 = vsel %vm284, %v357, 0.0
      %v391 = vadd.f32 %v389, %v390
      %v392 = vsel %vm284, %v358, 0.0
      %v393 = vadd.f32 %v391, %v392
      %v394 = vsel %vm284, %v359, 0.0
      %v395 = vadd.f32 %v393, %v394
      %v396 = vsel %vm284, %v360, 0.0
      %v397 = vadd.f32 %v395, %v396
      %v398 = vsel %vm284, %v361, 0.0
      %v399 = vadd.f32 %v397, %v398
      %v400 = vsel %vm284, %v362, 0.0
      %v401 = vadd.f32 %v399, %v400
      %v402 = vsel %vm284, %v363, 0.0
      %v403 = vadd.f32 %v401, %v402
      %v404 = vsel %vm284, %v364, 0.0
      %v405 = vadd.f32 %v403, %v404
      %v406 = vsel %vm284, %v365, 0.0
      %v407 = vadd.f32 %v405, %v406
      %v408 = vsel %vm284, %v366, 0.0
      %v409 = vadd.f32 %v407, %v408
      %v410 = vsel %vm284, %v367, 0.0
      %v411 = vadd.f32 %v409, %v410
      %v412 = vsel %vm284, %v368, 0.0
      %v413 = vadd.f32 %v411, %v412
      %v414 = vsel %vm284, %v369, 0.0
      %v415 = vadd.f32 %v413, %v414
      %v416 = vsel %vm284, %v370, 0.0
      %v417 = vadd.f32 %v415, %v416
      %v418 = vsel %vm284, %v371, 0.0
      %v419 = vadd.f32 %v417, %v418
      %v420 = vsel %vm284, %v372, 0.0
      %v421 = vadd.f32 %v419, %v420
      %v422 = vsel %vm284, %v373, 0.0
      %v423 = vadd.f32 %v421, %v422
      %v424 = vsel %vm284, %v374, 0.0
      %v425 = vadd.f32 %v423, %v424
      %v426 = vsel %vm284, %v375, 0.0
      %v427 = vadd.f32 %v425, %v426
      %v428 = vsel %vm284, %v376, 0.0
      %v429 = vadd.f32 %v427, %v428
      %v430 = vsel %vm284, %v377, 0.0
      %v431 = vadd.f32 %v429, %v430
      %v432 = vsel %vm284, %v378, 0.0
      %v433 = vadd.f32 %v431, %v432
      %v434 = vsel %vm284, %v379, 0.0
      %v435 = vadd.f32 %v433, %v434
      %v436 = vsel %vm284, %v380, 0.0
      %v437 = vadd.f32 %v435, %v436
      %v438 = vsel %vm284, %v381, 0.0
      %v439 = vadd.f32 %v437, %v438
      %v440 = vsel %vm284, %v382, 0.0
      %v441 = vadd.f32 %v439, %v440
      %v442 = vsel %vm284, %v383, 0.0
      %v443 = vadd.f32 %v441, %v442
      %v444 = vsel %vm284, %v384, 0.0
      %v445 = vadd.f32 %v443, %v444
      %v446 = vsel %vm284, %v385, 0.0
      %v447 = vadd.f32 %v445, %v446
      %v448 = vsel %vm284, %v386, 0.0
      %v449 = vadd.f32 %v447, %v448
      %v450 = vrot.slane %v449, 4
      %v451 = vadd.f32 %v449, %v450
      %v452 = vrot.slane %v451, 2
      %v453 = vadd.f32 %v451, %v452
      %v454 = vrot.slane %v453, 1
      %v455 = vadd.f32 %v453, %v454
      %v456 = vmul.f32 %v455, 0.00390625
      %v457 = vmul.f32 %v354, %v354
      %v458 = vsub.f32 %v456, %v457
      %v459 = vmax.f32 %v458, 0.0
      %v460 = vsub.f32 %v252, %v354
      %v461 = vsub.f32 %v253, %v354
      %v462 = vsub.f32 %v254, %v354
      %v463 = vsub.f32 %v255, %v354
      %v464 = vsub.f32 %v256, %v354
      %v465 = vsub.f32 %v257, %v354
      %v466 = vsub.f32 %v258, %v354
      %v467 = vsub.f32 %v259, %v354
      %v468 = vsub.f32 %v260, %v354
      %v469 = vsub.f32 %v261, %v354
      %v470 = vsub.f32 %v262, %v354
      %v471 = vsub.f32 %v263, %v354
      %v472 = vsub.f32 %v264, %v354
      %v473 = vsub.f32 %v265, %v354
      %v474 = vsub.f32 %v266, %v354
      %v475 = vsub.f32 %v267, %v354
      %v476 = vsub.f32 %v268, %v354
      %v477 = vsub.f32 %v269, %v354
      %v478 = vsub.f32 %v270, %v354
      %v479 = vsub.f32 %v271, %v354
      %v480 = vsub.f32 %v272, %v354
      %v481 = vsub.f32 %v273, %v354
      %v482 = vsub.f32 %v274, %v354
      %v483 = vsub.f32 %v275, %v354
      %v484 = vsub.f32 %v276, %v354
      %v485 = vsub.f32 %v277, %v354
      %v486 = vsub.f32 %v278, %v354
      %v487 = vsub.f32 %v279, %v354
      %v488 = vsub.f32 %v280, %v354
      %v489 = vsub.f32 %v281, %v354
      %v490 = vsub.f32 %v282, %v354
      %v491 = vsub.f32 %v283, %v354
      %v492 = vadd.f32 %v459, 1e-05
      %v493 = vrsqrt.pop %v492
      %v494 = vmul.f32 %v460, %v493
      %v495 = vmul.f32 %v461, %v493
      %v496 = vmul.f32 %v462, %v493
      %v497 = vmul.f32 %v463, %v493
      %v498 = vmul.f32 %v464, %v493
      %v499 = vmul.f32 %v465, %v493
      %v500 = vmul.f32 %v466, %v493
      %v501 = vmul.f32 %v467, %v493
      %v502 = vmul.f32 %v468, %v493
      %v503 = vmul.f32 %v469, %v493
      %v504 = vmul.f32 %v470, %v493
      %v505 = vmul.f32 %v471, %v493
      %v506 = vmul.f32 %v472, %v493
      %v507 = vmul.f32 %v473, %v493
      %v508 = vmul.f32 %v474, %v493
      %v509 = vmul.f32 %v475, %v493
      %v510 = vmul.f32 %v476, %v493
      %v511 = vmul.f32 %v477, %v493
      %v512 = vmul.f32 %v478, %v493
      %v513 = vmul.f32 %v479, %v493
      %v514 = vmul.f32 %v480, %v493
      %v515 = vmul.f32 %v481, %v493
      %v516 = vmul.f32 %v482, %v493
      %v517 = vmul.f32 %v483, %v493
      %v518 = vmul.f32 %v484, %v493
      %v519 = vmul.f32 %v485, %v493
      %v520 = vmul.f32 %v486, %v493
      %v521 = vmul.f32 %v487, %v493
      %v522 = vmul.f32 %v488, %v493
      %v523 = vmul.f32 %v489, %v493
      %v524 = vmul.f32 %v490, %v493
      %v525 = vmul.f32 %v491, %v493
      %v526 = vld [vmem:[%s237] sm:$0x1]
      %v528 = vlaneseq
      %v529 = vshrl.u32 %v528, 7
      %v530 = vsub.s32 0, %v529
      %v531 = vrot.slane %v526, %v530
      %v533 = vmul.f32 %v531, %v494
      %v534 = vmul.f32 %v531, %v495
      %v535 = vmul.f32 %v531, %v496
      %v536 = vmul.f32 %v531, %v497
      %v537 = vmul.f32 %v531, %v498
      %v538 = vmul.f32 %v531, %v499
      %v539 = vmul.f32 %v531, %v500
      %v540 = vmul.f32 %v531, %v501
      %v541 = vmul.f32 %v531, %v502
      %v542 = vmul.f32 %v531, %v503
      %v543 = vmul.f32 %v531, %v504
      %v544 = vmul.f32 %v531, %v505
      %v545 = vmul.f32 %v531, %v506
      %v546 = vmul.f32 %v531, %v507
      %v547 = vmul.f32 %v531, %v508
      %v548 = vmul.f32 %v531, %v509
      %v549 = vmul.f32 %v531, %v510
      %v550 = vmul.f32 %v531, %v511
      %v551 = vmul.f32 %v531, %v512
      %v552 = vmul.f32 %v531, %v513
      %v553 = vmul.f32 %v531, %v514
      %v554 = vmul.f32 %v531, %v515
      %v555 = vmul.f32 %v531, %v516
      %v556 = vmul.f32 %v531, %v517
      %v557 = vmul.f32 %v531, %v518
      %v558 = vmul.f32 %v531, %v519
      %v559 = vmul.f32 %v531, %v520
      %v560 = vmul.f32 %v531, %v521
      %v561 = vmul.f32 %v531, %v522
      %v562 = vmul.f32 %v531, %v523
      %v563 = vmul.f32 %v531, %v524
      %v564 = vmul.f32 %v531, %v525
      %v565 = vld [vmem:[%s243] sm:$0x1]
      %v567 = vlaneseq
      %v568 = vshrl.u32 %v567, 7
      %v569 = vsub.s32 0, %v568
      %v570 = vrot.slane %v565, %v569
      %v572 = vadd.f32 %v533, %v570
      %v573 = vadd.f32 %v534, %v570
      %v574 = vadd.f32 %v535, %v570
      %v575 = vadd.f32 %v536, %v570
      %v576 = vadd.f32 %v537, %v570
      %v577 = vadd.f32 %v538, %v570
      %v578 = vadd.f32 %v539, %v570
      %v579 = vadd.f32 %v540, %v570
      %v580 = vadd.f32 %v541, %v570
      %v581 = vadd.f32 %v542, %v570
      %v582 = vadd.f32 %v543, %v570
      %v583 = vadd.f32 %v544, %v570
      %v584 = vadd.f32 %v545, %v570
      %v585 = vadd.f32 %v546, %v570
      %v586 = vadd.f32 %v547, %v570
      %v587 = vadd.f32 %v548, %v570
      %v588 = vadd.f32 %v549, %v570
      %v589 = vadd.f32 %v550, %v570
      %v590 = vadd.f32 %v551, %v570
      %v591 = vadd.f32 %v552, %v570
      %v592 = vadd.f32 %v553, %v570
      %v593 = vadd.f32 %v554, %v570
      %v594 = vadd.f32 %v555, %v570
      %v595 = vadd.f32 %v556, %v570
      %v596 = vadd.f32 %v557, %v570
      %v597 = vadd.f32 %v558, %v570
      %v598 = vadd.f32 %v559, %v570
      %v599 = vadd.f32 %v560, %v570
      %v600 = vadd.f32 %v561, %v570
      %v601 = vadd.f32 %v562, %v570
      %v602 = vadd.f32 %v563, %v570
      %v603 = vadd.f32 %v564, %v570
      %604 = vst.msk [vmem:[%s251] sm:$0xff] %vm284, %v572
      %605 = vst.msk [vmem:[%s251 + $0x8] sm:$0xff] %vm284, %v573
      %606 = vst.msk [vmem:[%s251 + $0x10] sm:$0xff] %vm284, %v574
      %607 = vst.msk [vmem:[%s251 + $0x18] sm:$0xff] %vm284, %v575
      %608 = vst.msk [vmem:[%s251 + $0x20] sm:$0xff] %vm284, %v576
      %609 = vst.msk [vmem:[%s251 + $0x28] sm:$0xff] %vm284, %v577
      %610 = vst.msk [vmem:[%s251 + $0x30] sm:$0xff] %vm284, %v578
      %611 = vst.msk [vmem:[%s251 + $0x38] sm:$0xff] %vm284, %v579
      %612 = vst.msk [vmem:[%s251 + $0x40] sm:$0xff] %vm284, %v580
      %613 = vst.msk [vmem:[%s251 + $0x48] sm:$0xff] %vm284, %v581
      %614 = vst.msk [vmem:[%s251 + $0x50] sm:$0xff] %vm284, %v582
      %615 = vst.msk [vmem:[%s251 + $0x58] sm:$0xff] %vm284, %v583
      %616 = vst.msk [vmem:[%s251 + $0x60] sm:$0xff] %vm284, %v584
      %617 = vst.msk [vmem:[%s251 + $0x68] sm:$0xff] %vm284, %v585
      %618 = vst.msk [vmem:[%s251 + $0x70] sm:$0xff] %vm284, %v586
      %619 = vst.msk [vmem:[%s251 + $0x78] sm:$0xff] %vm284, %v587
      %620 = vst.msk [vmem:[%s251 + $0x80] sm:$0xff] %vm284, %v588
      %621 = vst.msk [vmem:[%s251 + $0x88] sm:$0xff] %vm284, %v589
      %622 = vst.msk [vmem:[%s251 + $0x90] sm:$0xff] %vm284, %v590
      %623 = vst.msk [vmem:[%s251 + $0x98] sm:$0xff] %vm284, %v591
      %624 = vst.msk [vmem:[%s251 + $0xa0] sm:$0xff] %vm284, %v592
      %625 = vst.msk [vmem:[%s251 + $0xa8] sm:$0xff] %vm284, %v593
      %626 = vst.msk [vmem:[%s251 + $0xb0] sm:$0xff] %vm284, %v594
      %627 = vst.msk [vmem:[%s251 + $0xb8] sm:$0xff] %vm284, %v595
      %628 = vst.msk [vmem:[%s251 + $0xc0] sm:$0xff] %vm284, %v596
      %629 = vst.msk [vmem:[%s251 + $0xc8] sm:$0xff] %vm284, %v597
      %630 = vst.msk [vmem:[%s251 + $0xd0] sm:$0xff] %vm284, %v598
      %631 = vst.msk [vmem:[%s251 + $0xd8] sm:$0xff] %vm284, %v599
      %632 = vst.msk [vmem:[%s251 + $0xe0] sm:$0xff] %vm284, %v600
      %633 = vst.msk [vmem:[%s251 + $0xe8] sm:$0xff] %vm284, %v601
      %634 = vst.msk [vmem:[%s251 + $0xf0] sm:$0xff] %vm284, %v602
      %635 = vst.msk [vmem:[%s251 + $0xf8] sm:$0xff] %vm284, %v603
      %p636 = scmp.lt.s32.totalorder %s18, 1
      %s637 = scalar_select %p636, %s18, 1
      %p638 = scmp.lt.s32.totalorder %s19, 0
      %s639 = scalar_select %p638, %s19, 0
      %s640 = smul.addr %s637, 32
      %s641 = sadd.s32 %s639, %s640
      %s642 = smul.addr %s641, 8
      %s643 = scalar_lea.vmem %s3, %s642
      // Predicated region
      $region33: #{styled_conv_block.7} parent=31 // pred_check
        %p644 = pneg %p130
      $region34: #{styled_conv_block.7} parent=31 // pred_check_branch
        %646 = sbr.rel (%p644) target = $region36
      $region35: #{styled_conv_block.7} parent=31 // pred_region
        _
      $region36: #{styled_conv_block.7} parent=31 // pred_fallthru
        _
    $region32: #{styled_conv_block.7} parent=5 // pred_fallthru
      _
    %p647 = scmp.le.s32.totalorder 2, %s9
    // Predicated region
    $region37: #{styled_conv_block.7} parent=5 // pred_check
      %p648 = pneg %p647
    $region38: #{styled_conv_block.7} parent=5 // pred_check_branch
      %650 = sbr.rel (%p648) target = $region40
    $region39: #{styled_conv_block.7} parent=5 // pred_region
      %s651 = ssub.s32 %s9, 2
      // Predicated region
      $region41: #{styled_conv_block.7} parent=39 // pred_check
        %p652 = pneg %p136
      $region42: #{styled_conv_block.7} parent=39 // pred_check_branch
        %654 = sbr.rel (%p652) target = $region44
      $region43: #{styled_conv_block.7} parent=39 // pred_region
        %p655 = scmp.lt.s32.totalorder %s20, 1
        %s656 = scalar_select %p655, %s20, 1
        %p657 = scmp.lt.s32.totalorder %s21, 0
        %s658 = scalar_select %p657, %s21, 0
        %s659 = smul.addr %s656, 32
        %s660 = sadd.s32 %s658, %s659
        %s661 = smul.addr %s660, 8
        %s662 = scalar_lea.vmem %s3, %s661
      $region44: #{styled_conv_block.7} parent=39 // pred_fallthru
        _
    $region40: #{styled_conv_block.7} parent=5 // pred_fallthru
      _
  $region6: #{styled_conv_block.7} parent=0 // loop_footer
    %s13 = sadd.s32 1, %s9
  $region7: #{styled_conv_block.7} parent=0 // loop_footer_branch
    %8 = sbr.rel target = $region3
  $region8: #{styled_conv_block.7} parent=0 // loop_exit
    _

// kernel: styled_conv_block.6
$region0: #{styled_conv_block.6}
  #allocation0 [shape = 'u32[]', space=smem, size = 0x4, offset = 0x4, fixed_abs, tag = 'smem constant byte address 0x4 - core index']
  #allocation1 [shape = 'u32[144,128]{1,0:T(1,128)}', space=vmem, size = 0x12000, scoped, tag = 'internal scratch']
  #allocation2 [shape = 'f32[512,4]{1,0:T(8,128)}', space=vmem, size = 0x40000, scoped, tag = 'scratch operand']
  %s0 = inlined_call_operand.vmem [shape: f32[512,36], index: 0, kind: input, shape index: {}]
  %s1 = inlined_call_operand.vmem [shape: f32[36,4], index: 1, kind: input, shape index: {}]
  %s2 = inlined_call_operand.vmem [shape: f32[1,4], index: 2, kind: input, shape index: {}]
  %s3 = inlined_call_operand.vmem [shape: f32[512,1], index: 3, kind: input, shape index: {}]
  %s4 = inlined_call_operand.vmem [shape: f32[1,4], index: 4, kind: input, shape index: {}]
  %s5 = inlined_call_operand.vmem [shape: f32[512,4], index: 5, kind: output, shape index: {}]
  %s6 = sld [smem:[#allocation0]]
  $region38: #{styled_conv_block.6} parent=0
    _
  %s8 = ssub.s32 1, %s6
  %s9 = scalar_select 0, %s8, %s6
  // Predicated region
  $region2: #{styled_conv_block.6} parent=0 // pred_check
    _
  $region3: #{styled_conv_block.6} parent=0 // pred_check_branch
    %11 = sbr.rel (0) target = $region5
  $region4: #{styled_conv_block.6} parent=0 // pred_region
    _
  $region5: #{styled_conv_block.6} parent=0 // pred_fallthru
    _
  // Predicated region
  $region6: #{styled_conv_block.6} parent=0 // pred_check
    _
  $region7: #{styled_conv_block.6} parent=0 // pred_check_branch
    %13 = sbr.rel (0) target = $region9
  $region8: #{styled_conv_block.6} parent=0 // pred_region
    _
  $region9: #{styled_conv_block.6} parent=0 // pred_fallthru
    _
  // Predicated region
  $region10: #{styled_conv_block.6} parent=0 // pred_check
    _
  $region11: #{styled_conv_block.6} parent=0 // pred_check_branch
    %15 = sbr.rel (0) target = $region13
  $region12: #{styled_conv_block.6} parent=0 // pred_region
    _
  $region13: #{styled_conv_block.6} parent=0 // pred_fallthru
    _
  // Predicated region
  $region14: #{styled_conv_block.6} parent=0 // pred_check
    _
  $region15: #{styled_conv_block.6} parent=0 // pred_check_branch
    %17 = sbr.rel (0) target = $region17
  $region16: #{styled_conv_block.6} parent=0 // pred_region
    _
  $region17: #{styled_conv_block.6} parent=0 // pred_fallthru
    _
  // Predicated region
  $region18: #{styled_conv_block.6} parent=0 // pred_check
    _
  $region19: #{styled_conv_block.6} parent=0 // pred_check_branch
    %19 = sbr.rel (0) target = $region21
  $region20: #{styled_conv_block.6} parent=0 // pred_region
    _
  $region21: #{styled_conv_block.6} parent=0 // pred_fallthru
    _
  %p20 = scmp.eq.s32.totalorder 0, 0
  // Predicated region
  $region22: #{styled_conv_block.6} parent=0 // pred_check
    %p21 = pneg %p20
  $region23: #{styled_conv_block.6} parent=0 // pred_check_branch
    %23 = sbr.rel (%p21) target = $region25
  $region24: #{styled_conv_block.6} parent=0 // pred_region
    %vm24 = vcmask 31744
    %25 = vst.msk [vmem:[#allocation2] sm:$0xff] %vm24, 0.0
    %26 = vst.msk [vmem:[#allocation2 + $0x8] sm:$0xff] %vm24, 0.0
    %27 = vst.msk [vmem:[#allocation2 + $0x10] sm:$0xff] %vm24, 0.0
    %28 = vst.msk [vmem:[#allocation2 + $0x18] sm:$0xff] %vm24, 0.0
    %29 = vst.msk [vmem:[#allocation2 + $0x20] sm:$0xff] %vm24, 0.0
    %30 = vst.msk [vmem:[#allocation2 + $0x28] sm:$0xff] %vm24, 0.0
    %31 = vst.msk [vmem:[#allocation2 + $0x30] sm:$0xff] %vm24, 0.0
    %32 = vst.msk [vmem:[#allocation2 + $0x38] sm:$0xff] %vm24, 0.0
    %33 = vst.msk [vmem:[#allocation2 + $0x40] sm:$0xff] %vm24, 0.0
    %34 = vst.msk [vmem:[#allocation2 + $0x48] sm:$0xff] %vm24, 0.0
    %35 = vst.msk [vmem:[#allocation2 + $0x50] sm:$0xff] %vm24, 0.0
    %36 = vst.msk [vmem:[#allocation2 + $0x58] sm:$0xff] %vm24, 0.0
    %37 = vst.msk [vmem:[#allocation2 + $0x60] sm:$0xff] %vm24, 0.0
    %38 = vst.msk [vmem:[#allocation2 + $0x68] sm:$0xff] %vm24, 0.0
    %39 = vst.msk [vmem:[#allocation2 + $0x70] sm:$0xff] %vm24, 0.0
    %40 = vst.msk [vmem:[#allocation2 + $0x78] sm:$0xff] %vm24, 0.0
    %41 = vst.msk [vmem:[#allocation2 + $0x80] sm:$0xff] %vm24, 0.0
    %42 = vst.msk [vmem:[#allocation2 + $0x88] sm:$0xff] %vm24, 0.0
    %43 = vst.msk [vmem:[#allocation2 + $0x90] sm:$0xff] %vm24, 0.0
    %44 = vst.msk [vmem:[#allocation2 + $0x98] sm:$0xff] %vm24, 0.0
    %45 = vst.msk [vmem:[#allocation2 + $0xa0] sm:$0xff] %vm24, 0.0
    %46 = vst.msk [vmem:[#allocation2 + $0xa8] sm:$0xff] %vm24, 0.0
    %47 = vst.msk [vmem:[#allocation2 + $0xb0] sm:$0xff] %vm24, 0.0
    %48 = vst.msk [vmem:[#allocation2 + $0xb8] sm:$0xff] %vm24, 0.0
    %49 = vst.msk [vmem:[#allocation2 + $0xc0] sm:$0xff] %vm24, 0.0
    %50 = vst.msk [vmem:[#allocation2 + $0xc8] sm:$0xff] %vm24, 0.0
    %51 = vst.msk [vmem:[#allocation2 + $0xd0] sm:$0xff] %vm24, 0.0
    %52 = vst.msk [vmem:[#allocation2 + $0xd8] sm:$0xff] %vm24, 0.0
    %53 = vst.msk [vmem:[#allocation2 + $0xe0] sm:$0xff] %vm24, 0.0
    %54 = vst.msk [vmem:[#allocation2 + $0xe8] sm:$0xff] %vm24, 0.0
    %55 = vst.msk [vmem:[#allocation2 + $0xf0] sm:$0xff] %vm24, 0.0
    %56 = vst.msk [vmem:[#allocation2 + $0xf8] sm:$0xff] %vm24, 0.0
    %57 = vst.msk [vmem:[#allocation2 + $0x100] sm:$0xff] %vm24, 0.0
    %58 = vst.msk [vmem:[#allocation2 + $0x108] sm:$0xff] %vm24, 0.0
    %59 = vst.msk [vmem:[#allocation2 + $0x110] sm:$0xff] %vm24, 0.0
    %60 = vst.msk [vmem:[#allocation2 + $0x118] sm:$0xff] %vm24, 0.0
    %61 = vst.msk [vmem:[#allocation2 + $0x120] sm:$0xff] %vm24, 0.0
    %62 = vst.msk [vmem:[#allocation2 + $0x128] sm:$0xff] %vm24, 0.0
    %63 = vst.msk [vmem:[#allocation2 + $0x130] sm:$0xff] %vm24, 0.0
    %64 = vst.msk [vmem:[#allocation2 + $0x138] sm:$0xff] %vm24, 0.0
    %65 = vst.msk [vmem:[#allocation2 + $0x140] sm:$0xff] %vm24, 0.0
    %66 = vst.msk [vmem:[#allocation2 + $0x148] sm:$0xff] %vm24, 0.0
    %67 = vst.msk [vmem:[#allocation2 + $0x150] sm:$0xff] %vm24, 0.0
    %68 = vst.msk [vmem:[#allocation2 + $0x158] sm:$0xff] %vm24, 0.0
    %69 = vst.msk [vmem:[#allocation2 + $0x160] sm:$0xff] %vm24, 0.0
    %70 = vst.msk [vmem:[#allocation2 + $0x168] sm:$0xff] %vm24, 0.0
    %71 = vst.msk [vmem:[#allocation2 + $0x170] sm:$0xff] %vm24, 0.0
    %72 = vst.msk [vmem:[#allocation2 + $0x178] sm:$0xff] %vm24, 0.0
    %73 = vst.msk [vmem:[#allocation2 + $0x180] sm:$0xff] %vm24, 0.0
    %74 = vst.msk [vmem:[#allocation2 + $0x188] sm:$0xff] %vm24, 0.0
    %75 = vst.msk [vmem:[#allocation2 + $0x190] sm:$0xff] %vm24, 0.0
    %76 = vst.msk [vmem:[#allocation2 + $0x198] sm:$0xff] %vm24, 0.0
    %77 = vst.msk [vmem:[#allocation2 + $0x1a0] sm:$0xff] %vm24, 0.0
    %78 = vst.msk [vmem:[#allocation2 + $0x1a8] sm:$0xff] %vm24, 0.0
    %79 = vst.msk [vmem:[#allocation2 + $0x1b0] sm:$0xff] %vm24, 0.0
    %80 = vst.msk [vmem:[#allocation2 + $0x1b8] sm:$0xff] %vm24, 0.0
    %81 = vst.msk [vmem:[#allocation2 + $0x1c0] sm:$0xff] %vm24, 0.0
    %82 = vst.msk [vmem:[#allocation2 + $0x1c8] sm:$0xff] %vm24, 0.0
    %83 = vst.msk [vmem:[#allocation2 + $0x1d0] sm:$0xff] %vm24, 0.0
    %84 = vst.msk [vmem:[#allocation2 + $0x1d8] sm:$0xff] %vm24, 0.0
    %85 = vst.msk [vmem:[#allocation2 + $0x1e0] sm:$0xff] %vm24, 0.0
    %86 = vst.msk [vmem:[#allocation2 + $0x1e8] sm:$0xff] %vm24, 0.0
    %87 = vst.msk [vmem:[#allocation2 + $0x1f0] sm:$0xff] %vm24, 0.0
    %88 = vst.msk [vmem:[#allocation2 + $0x1f8] sm:$0xff] %vm24, 0.0
  $region25: #{styled_conv_block.6} parent=0 // pred_fallthru
    _
  %v89 = vld [vmem:[#allocation2] sm:$0xff]
  %v90 = vld [vmem:[#allocation2 + $0x8] sm:$0xff]
  %v91 = vld [vmem:[#allocation2 + $0x10] sm:$0xff]
  %v92 = vld [vmem:[#allocation2 + $0x18] sm:$0xff]
  %v93 = vld [vmem:[#allocation2 + $0x20] sm:$0xff]
  %v94 = vld [vmem:[#allocation2 + $0x28] sm:$0xff]
  %v95 = vld [vmem:[#allocation2 + $0x30] sm:$0xff]
  %v96 = vld [vmem:[#allocation2 + $0x38] sm:$0xff]
  %v97 = vld [vmem:[#allocation2 + $0x40] sm:$0xff]
  %v98 = vld [vmem:[#allocation2 + $0x48] sm:$0xff]
  %v99 = vld [vmem:[#allocation2 + $0x50] sm:$0xff]
  %v100 = vld [vmem:[#allocation2 + $0x58] sm:$0xff]
  %v101 = vld [vmem:[#allocation2 + $0x60] sm:$0xff]
  %v102 = vld [vmem:[#allocation2 + $0x68] sm:$0xff]
  %v103 = vld [vmem:[#allocation2 + $0x70] sm:$0xff]
  %v104 = vld [vmem:[#allocation2 + $0x78] sm:$0xff]
  %v105 = vld [vmem:[#allocation2 + $0x80] sm:$0xff]
  %v106 = vld [vmem:[#allocation2 + $0x88] sm:$0xff]
  %v107 = vld [vmem:[#allocation2 + $0x90] sm:$0xff]
  %v108 = vld [vmem:[#allocation2 + $0x98] sm:$0xff]
  %v109 = vld [vmem:[#allocation2 + $0xa0] sm:$0xff]
  %v110 = vld [vmem:[#allocation2 + $0xa8] sm:$0xff]
  %v111 = vld [vmem:[#allocation2 + $0xb0] sm:$0xff]
  %v112 = vld [vmem:[#allocation2 + $0xb8] sm:$0xff]
  %v113 = vld [vmem:[#allocation2 + $0xc0] sm:$0xff]
  %v114 = vld [vmem:[#allocation2 + $0xc8] sm:$0xff]
  %v115 = vld [vmem:[#allocation2 + $0xd0] sm:$0xff]
  %v116 = vld [vmem:[#allocation2 + $0xd8] sm:$0xff]
  %v117 = vld [vmem:[#allocation2 + $0xe0] sm:$0xff]
  %v118 = vld [vmem:[#allocation2 + $0xe8] sm:$0xff]
  %v119 = vld [vmem:[#allocation2 + $0xf0] sm:$0xff]
  %v120 = vld [vmem:[#allocation2 + $0xf8] sm:$0xff]
  %v121 = vld [vmem:[#allocation2 + $0x100] sm:$0xff]
  %v122 = vld [vmem:[#allocation2 + $0x108] sm:$0xff]
  %v123 = vld [vmem:[#allocation2 + $0x110] sm:$0xff]
  %v124 = vld [vmem:[#allocation2 + $0x118] sm:$0xff]
  %v125 = vld [vmem:[#allocation2 + $0x120] sm:$0xff]
  %v126 = vld [vmem:[#allocation2 + $0x128] sm:$0xff]
  %v127 = vld [vmem:[#allocation2 + $0x130] sm:$0xff]
  %v128 = vld [vmem:[#allocation2 + $0x138] sm:$0xff]
  %v129 = vld [vmem:[#allocation2 + $0x140] sm:$0xff]
  %v130 = vld [vmem:[#allocation2 + $0x148] sm:$0xff]
  %v131 = vld [vmem:[#allocation2 + $0x150] sm:$0xff]
  %v132 = vld [vmem:[#allocation2 + $0x158] sm:$0xff]
  %v133 = vld [vmem:[#allocation2 + $0x160] sm:$0xff]
  %v134 = vld [vmem:[#allocation2 + $0x168] sm:$0xff]
  %v135 = vld [vmem:[#allocation2 + $0x170] sm:$0xff]
  %v136 = vld [vmem:[#allocation2 + $0x178] sm:$0xff]
  %v137 = vld [vmem:[#allocation2 + $0x180] sm:$0xff]
  %v138 = vld [vmem:[#allocation2 + $0x188] sm:$0xff]
  %v139 = vld [vmem:[#allocation2 + $0x190] sm:$0xff]
  %v140 = vld [vmem:[#allocation2 + $0x198] sm:$0xff]
  %v141 = vld [vmem:[#allocation2 + $0x1a0] sm:$0xff]
  %v142 = vld [vmem:[#allocation2 + $0x1a8] sm:$0xff]
  %v143 = vld [vmem:[#allocation2 + $0x1b0] sm:$0xff]
  %v144 = vld [vmem:[#allocation2 + $0x1b8] sm:$0xff]
  %v145 = vld [vmem:[#allocation2 + $0x1c0] sm:$0xff]
  %v146 = vld [vmem:[#allocation2 + $0x1c8] sm:$0xff]
  %v147 = vld [vmem:[#allocation2 + $0x1d0] sm:$0xff]
  %v148 = vld [vmem:[#allocation2 + $0x1d8] sm:$0xff]
  %v149 = vld [vmem:[#allocation2 + $0x1e0] sm:$0xff]
  %v150 = vld [vmem:[#allocation2 + $0x1e8] sm:$0xff]
  %v151 = vld [vmem:[#allocation2 + $0x1f0] sm:$0xff]
  %v152 = vld [vmem:[#allocation2 + $0x1f8] sm:$0xff]
  %v153 = vld [vmem:[%s0] sm:$0xff]
  %v154 = vld [vmem:[%s0 + $0x8] sm:$0xff]
  %v155 = vld [vmem:[%s0 + $0x10] sm:$0xff]
  %v156 = vld [vmem:[%s0 + $0x18] sm:$0xff]
  %v157 = vld [vmem:[%s0 + $0x20] sm:$0xff]
  %v158 = vld [vmem:[%s0 + $0x28] sm:$0xff]
  %v159 = vld [vmem:[%s0 + $0x30] sm:$0xff]
  %v160 = vld [vmem:[%s0 + $0x38] sm:$0xff]
  %v161 = vld [vmem:[%s0 + $0x40] sm:$0xff]
  %v162 = vld [vmem:[%s0 + $0x48] sm:$0xff]
  %v163 = vld [vmem:[%s0 + $0x50] sm:$0xff]
  %v164 = vld [vmem:[%s0 + $0x58] sm:$0xff]
  %v165 = vld [vmem:[%s0 + $0x60] sm:$0xff]
  %v166 = vld [vmem:[%s0 + $0x68] sm:$0xff]
  %v167 = vld [vmem:[%s0 + $0x70] sm:$0xff]
  %v168 = vld [vmem:[%s0 + $0x78] sm:$0xff]
  %v169 = vld [vmem:[%s0 + $0x80] sm:$0xff]
  %v170 = vld [vmem:[%s0 + $0x88] sm:$0xff]
  %v171 = vld [vmem:[%s0 + $0x90] sm:$0xff]
  %v172 = vld [vmem:[%s0 + $0x98] sm:$0xff]
  %v173 = vld [vmem:[%s0 + $0xa0] sm:$0xff]
  %v174 = vld [vmem:[%s0 + $0xa8] sm:$0xff]
  %v175 = vld [vmem:[%s0 + $0xb0] sm:$0xff]
  %v176 = vld [vmem:[%s0 + $0xb8] sm:$0xff]
  %v177 = vld [vmem:[%s0 + $0xc0] sm:$0xff]
  %v178 = vld [vmem:[%s0 + $0xc8] sm:$0xff]
  %v179 = vld [vmem:[%s0 + $0xd0] sm:$0xff]
  %v180 = vld [vmem:[%s0 + $0xd8] sm:$0xff]
  %v181 = vld [vmem:[%s0 + $0xe0] sm:$0xff]
  %v182 = vld [vmem:[%s0 + $0xe8] sm:$0xff]
  %v183 = vld [vmem:[%s0 + $0xf0] sm:$0xff]
  %v184 = vld [vmem:[%s0 + $0xf8] sm:$0xff]
  %v185 = vld [vmem:[%s0 + $0x100] sm:$0xff]
  %v186 = vld [vmem:[%s0 + $0x108] sm:$0xff]
  %v187 = vld [vmem:[%s0 + $0x110] sm:$0xff]
  %v188 = vld [vmem:[%s0 + $0x118] sm:$0xff]
  %v189 = vld [vmem:[%s0 + $0x120] sm:$0xff]
  %v190 = vld [vmem:[%s0 + $0x128] sm:$0xff]
  %v191 = vld [vmem:[%s0 + $0x130] sm:$0xff]
  %v192 = vld [vmem:[%s0 + $0x138] sm:$0xff]
  %v193 = vld [vmem:[%s0 + $0x140] sm:$0xff]
  %v194 = vld [vmem:[%s0 + $0x148] sm:$0xff]
  %v195 = vld [vmem:[%s0 + $0x150] sm:$0xff]
  %v196 = vld [vmem:[%s0 + $0x158] sm:$0xff]
  %v197 = vld [vmem:[%s0 + $0x160] sm:$0xff]
  %v198 = vld [vmem:[%s0 + $0x168] sm:$0xff]
  %v199 = vld [vmem:[%s0 + $0x170] sm:$0xff]
  %v200 = vld [vmem:[%s0 + $0x178] sm:$0xff]
  %v201 = vld [vmem:[%s0 + $0x180] sm:$0xff]
  %v202 = vld [vmem:[%s0 + $0x188] sm:$0xff]
  %v203 = vld [vmem:[%s0 + $0x190] sm:$0xff]
  %v204 = vld [vmem:[%s0 + $0x198] sm:$0xff]
  %v205 = vld [vmem:[%s0 + $0x1a0] sm:$0xff]
  %v206 = vld [vmem:[%s0 + $0x1a8] sm:$0xff]
  %v207 = vld [vmem:[%s0 + $0x1b0] sm:$0xff]
  %v208 = vld [vmem:[%s0 + $0x1b8] sm:$0xff]
  %v209 = vld [vmem:[%s0 + $0x1c0] sm:$0xff]
  %v210 = vld [vmem:[%s0 + $0x1c8] sm:$0xff]
  %v211 = vld [vmem:[%s0 + $0x1d0] sm:$0xff]
  %v212 = vld [vmem:[%s0 + $0x1d8] sm:$0xff]
  %v213 = vld [vmem:[%s0 + $0x1e0] sm:$0xff]
  %v214 = vld [vmem:[%s0 + $0x1e8] sm:$0xff]
  %v215 = vld [vmem:[%s0 + $0x1f0] sm:$0xff]
  %v216 = vld [vmem:[%s0 + $0x1f8] sm:$0xff]
  %v217 = vld [vmem:[%s1] sm:$0xff]
  %v218 = vld [vmem:[%s1 + $0x8] sm:$0xff]
  %v219 = vld [vmem:[%s1 + $0x10] sm:$0xff]
  %v220 = vld [vmem:[%s1 + $0x18] sm:$0xff]
  %v221 = vld [vmem:[%s1 + $0x20] sm:$0xf]
  %vm222 = vcmask 293888
  %v224 = vsel %vm222, %v153, 0
  %v227 = vsel %vm222, %v154, 0
  %v230 = vsel %vm222, %v155, 0
  %v233 = vsel %vm222, %v156, 0
  %v236 = vsel %vm222, %v157, 0
  %v239 = vsel %vm222, %v158, 0
  %v242 = vsel %vm222, %v159, 0
  %v245 = vsel %vm222, %v160, 0
  %v248 = vsel %vm222, %v161, 0
  %v251 = vsel %vm222, %v162, 0
  %v254 = vsel %vm222, %v163, 0
  %v257 = vsel %vm222, %v164, 0
  %v260 = vsel %vm222, %v165, 0
  %v263 = vsel %vm222, %v166, 0
  %v266 = vsel %vm222, %v167, 0
  %v269 = vsel %vm222, %v168, 0
  %v272 = vsel %vm222, %v169, 0
  %v275 = vsel %vm222, %v170, 0
  %v278 = vsel %vm222, %v171, 0
  %v281 = vsel %vm222, %v172, 0
  %v284 = vsel %vm222, %v173, 0
  %v287 = vsel %vm222, %v174, 0
  %v290 = vsel %vm222, %v175, 0
  %v293 = vsel %vm222, %v176, 0
  %v296 = vsel %vm222, %v177, 0
  %v299 = vsel %vm222, %v178, 0
  %v302 = vsel %vm222, %v179, 0
  %v305 = vsel %vm222, %v180, 0
  %v308 = vsel %vm222, %v181, 0
  %v311 = vsel %vm222, %v182, 0
  %v314 = vsel %vm222, %v183, 0
  %v317 = vsel %vm222, %v184, 0
  %v320 = vsel %vm222, %v185, 0
  %v323 = vsel %vm222, %v186, 0
  %v326 = vsel %vm222, %v187, 0
  %v329 = vsel %vm222, %v188, 0
  %v332 = vsel %vm222, %v189, 0
  %v335 = vsel %vm222, %v190, 0
  %v338 = vsel %vm222, %v191, 0
  %v341 = vsel %vm222, %v192, 0
  %v344 = vsel %vm222, %v193, 0
  %v347 = vsel %vm222, %v194, 0
  %v350 = vsel %vm222, %v195, 0
  %v353 = vsel %vm222, %v196, 0
  %v356 = vsel %vm222, %v197, 0
  %v359 = vsel %vm222, %v198, 0
  %v362 = vsel %vm222, %v199, 0
  %v365 = vsel %vm222, %v200, 0
  %v368 = vsel %vm222, %v201, 0
  %v371 = vsel %vm222, %v202, 0
  %v374 = vsel %vm222, %v203, 0
  %v377 = vsel %vm222, %v204, 0
  %v380 = vsel %vm222, %v205, 0
  %v383 = vsel %vm222, %v206, 0
  %v386 = vsel %vm222, %v207, 0
  %v389 = vsel %vm222, %v208, 0
  %v392 = vsel %vm222, %v209, 0
  %v395 = vsel %vm222, %v210, 0
  %v398 = vsel %vm222, %v211, 0
  %v401 = vsel %vm222, %v212, 0
  %v404 = vsel %vm222, %v213, 0
  %v407 = vsel %vm222, %v214, 0
  %v410 = vsel %vm222, %v215, 0
  %v413 = vsel %vm222, %v216, 0
  %vm415 = vcmask 1043456
  %v417 = vsel %vm415, %v221, 0
  %419 = vmatprep.subr.mxu0 0.0
  %420 = vmatpush1.msra.mxu0 0.0
  %421 = vmatprep.subr.mxu0 0.0
  %422 = vmatpush1.msra.mxu0 0.0
  %423 = vmatprep.subr.mxu0 0.0
  %424 = vmatpush1.msra.mxu0 0.0
  %425 = vmatprep.subr.mxu0 0.0
  %426 = vmatpush1.msra.mxu0 0.0
  %427 = vmatprep.subr.mxu0 0.0
  %428 = vmatpush1.msra.mxu0 0.0
  %429 = vmatprep.subr.mxu0 0.0
  %430 = vmatpush1.msra.mxu0 0.0
  %431 = vmatprep.subr.mxu0 0.0
  %432 = vmatpush1.msra.mxu0 0.0
  %433 = vmatprep.subr.mxu0 0.0
  %434 = vmatpush1.msra.mxu0 0.0
  %435 = vmatprep.subr.mxu0 0.0
  %436 = vmatpush1.msra.mxu0 0.0
  %437 = vmatprep.subr.mxu0 0.0
  %438 = vmatpush1.msra.mxu0 0.0
  %439 = vmatprep.subr.mxu0 0.0
  %440 = vmatpush1.msra.mxu0 0.0
  %441 = vmatprep.subr.mxu0 0.0
  %442 = vmatpush1.msra.mxu0 %v417
  %443 = vmatprep.subr.mxu0 0.0
  %444 = vmatpush1.msra.mxu0 %v220
  %445 = vmatprep.subr.mxu0 0.0
  %446 = vmatpush1.msra.mxu0 %v219
  %447 = vmatprep.subr.mxu0 0.0
  %448 = vmatpush1.msra.mxu0 %v218
  %449 = vmatprep.subr.mxu0 0.0
  %450 = vmatpush1.msra.mxu0 %v217
  %451 = vmatprep.subr.mxu0 0.0
  %452 = vmatpush2.msra.mxu0 0.0
  %453 = vmatprep.subr.mxu0 0.0
  %454 = vmatpush2.msra.mxu0 0.0
  %455 = vmatprep.subr.mxu0 0.0
  %456 = vmatpush2.msra.mxu0 0.0
  %457 = vmatprep.subr.mxu0 0.0
  %458 = vmatpush2.msra.mxu0 0.0
  %459 = vmatprep.subr.mxu0 0.0
  %460 = vmatpush2.msra.mxu0 0.0
  %461 = vmatprep.subr.mxu0 0.0
  %462 = vmatpush2.msra.mxu0 0.0
  %463 = vmatprep.subr.mxu0 0.0
  %464 = vmatpush2.msra.mxu0 0.0
  %465 = vmatprep.subr.mxu0 0.0
  %466 = vmatpush2.msra.mxu0 0.0
  %467 = vmatprep.subr.mxu0 0.0
  %468 = vmatpush2.msra.mxu0 0.0
  %469 = vmatprep.subr.mxu0 0.0
  %470 = vmatpush2.msra.mxu0 0.0
  %471 = vmatprep.subr.mxu0 0.0
  %472 = vmatpush2.msra.mxu0 0.0
  %473 = vmatprep.subr.mxu0 0.0
  %474 = vmatpush2.msra.mxu0 0.0
  %475 = vmatprep.subr.mxu0 0.0
  %476 = vmatpush2.msra.mxu0 0.0
  %477 = vmatprep.subr.mxu0 0.0
  %478 = vmatpush2.msra.mxu0 0.0
  %479 = vmatprep.subr.mxu0 0.0
  %480 = vmatpush2.msra.mxu0 0.0
  %481 = vmatprep.subr.mxu0 0.0
  %482 = vmatpush2.msra.mxu0 0.0
  %483 = vmatprep.mubr.f32.mxu0 0.0
  %484 = vmatmul.mubr.f32.gmra.mxu0 %v224
  %v485 = vpop.f32.mrf.mxu0
  %v486 = vadd.f32 0.0, %v485
  %v487 = vpop.f32.mrf.mxu0
  %488 = vmatprep.mubr.f32.mxu0 0.0
  %489 = vmatmul.mubr.f32.gmra.mxu0 %v227
  %v490 = vpop.f32.mrf.mxu0
  %v491 = vadd.f32 0.0, %v490
  %v492 = vpop.f32.mrf.mxu0
  %493 = vmatprep.mubr.f32.mxu0 0.0
  %494 = vmatmul.mubr.f32.gmra.mxu0 %v230
  %v495 = vpop.f32.mrf.mxu0
  %v496 = vadd.f32 0.0, %v495
  %v497 = vpop.f32.mrf.mxu0
  %498 = vmatprep.mubr.f32.mxu0 0.0
  %499 = vmatmul.mubr.f32.gmra.mxu0 %v233
  %v500 = vpop.f32.mrf.mxu0
  %v501 = vadd.f32 0.0, %v500
  %v502 = vpop.f32.mrf.mxu0
  %503 = vmatprep.mubr.f32.mxu0 0.0
  %504 = vmatmul.mubr.f32.gmra.mxu0 %v236
  %v505 = vpop.f32.mrf.mxu0
  %v506 = vadd.f32 0.0, %v505
  %v507 = vpop.f32.mrf.mxu0
  %508 = vmatprep.mubr.f32.mxu0 0.0
  %509 = vmatmul.mubr.f32.gmra.mxu0 %v239
  %v510 = vpop.f32.mrf.mxu0
  %v511 = vadd.f32 0.0, %v510
  %v512 = vpop.f32.mrf.mxu0
  %513 = vmatprep.mubr.f32.mxu0 0.0
  %514 = vmatmul.mubr.f32.gmra.mxu0 %v242
  %v515 = vpop.f32.mrf.mxu0
  %v516 = vadd.f32 0.0, %v515
  %v517 = vpop.f32.mrf.mxu0
  %518 = vmatprep.mubr.f32.mxu0 0.0
  %519 = vmatmul.mubr.f32.gmra.mxu0 %v245
  %v520 = vpop.f32.mrf.mxu0
  %v521 = vadd.f32 0.0, %v520
  %v522 = vpop.f32.mrf.mxu0
  %523 = vmatprep.mubr.f32.mxu0 0.0
  %524 = vmatmul.mubr.f32.gmra.mxu0 %v248
  %v525 = vpop.f32.mrf.mxu0
  %v526 = vadd.f32 0.0, %v525
  %v527 = vpop.f32.mrf.mxu0
  %528 = vmatprep.mubr.f32.mxu0 0.0
  %529 = vmatmul.mubr.f32.gmra.mxu0 %v251
  %v530 = vpop.f32.mrf.mxu0
  %v531 = vadd.f32 0.0, %v530
  %v532 = vpop.f32.mrf.mxu0
  %533 = vmatprep.mubr.f32.mxu0 0.0
  %534 = vmatmul.mubr.f32.gmra.mxu0 %v254
  %v535 = vpop.f32.mrf.mxu0
  %v536 = vadd.f32 0.0, %v535
  %v537 = vpop.f32.mrf.mxu0
  %538 = vmatprep.mubr.f32.mxu0 0.0
  %539 = vmatmul.mubr.f32.gmra.mxu0 %v257
  %v540 = vpop.f32.mrf.mxu0
  %v541 = vadd.f32 0.0, %v540
  %v542 = vpop.f32.mrf.mxu0
  %543 = vmatprep.mubr.f32.mxu0 0.0
  %544 = vmatmul.mubr.f32.gmra.mxu0 %v260
  %v545 = vpop.f32.mrf.mxu0
  %v546 = vadd.f32 0.0, %v545
  %v547 = vpop.f32.mrf.mxu0
  %548 = vmatprep.mubr.f32.mxu0 0.0
  %549 = vmatmul.mubr.f32.gmra.mxu0 %v263
  %v550 = vpop.f32.mrf.mxu0
  %v551 = vadd.f32 0.0, %v550
  %v552 = vpop.f32.mrf.mxu0
  %553 = vmatprep.mubr.f32.mxu0 0.0
  %554 = vmatmul.mubr.f32.gmra.mxu0 %v266
  %v555 = vpop.f32.mrf.mxu0
  %v556 = vadd.f32 0.0, %v555
  %v557 = vpop.f32.mrf.mxu0
  %558 = vmatprep.mubr.f32.mxu0 0.0
  %559 = vmatmul.mubr.f32.gmra.mxu0 %v269
  %v560 = vpop.f32.mrf.mxu0
  %v561 = vadd.f32 0.0, %v560
  %v562 = vpop.f32.mrf.mxu0
  %563 = vmatprep.mubr.f32.mxu0 0.0
  %564 = vmatmul.mubr.f32.gmra.mxu0 %v272
  %v565 = vpop.f32.mrf.mxu0
  %v566 = vadd.f32 0.0, %v565
  %v567 = vpop.f32.mrf.mxu0
  %568 = vmatprep.mubr.f32.mxu0 0.0
  %569 = vmatmul.mubr.f32.gmra.mxu0 %v275
  %v570 = vpop.f32.mrf.mxu0
  %v571 = vadd.f32 0.0, %v570
  %v572 = vpop.f32.mrf.mxu0
  %573 = vmatprep.mubr.f32.mxu0 0.0
  %574 = vmatmul.mubr.f32.gmra.mxu0 %v278
  %v575 = vpop.f32.mrf.mxu0
  %v576 = vadd.f32 0.0, %v575
  %v577 = vpop.f32.mrf.mxu0
  %578 = vmatprep.mubr.f32.mxu0 0.0
  %579 = vmatmul.mubr.f32.gmra.mxu0 %v281
  %v580 = vpop.f32.mrf.mxu0
  %v581 = vadd.f32 0.0, %v580
  %v582 = vpop.f32.mrf.mxu0
  %583 = vmatprep.mubr.f32.mxu0 0.0
  %584 = vmatmul.mubr.f32.gmra.mxu0 %v284
  %v585 = vpop.f32.mrf.mxu0
  %v586 = vadd.f32 0.0, %v585
  %v587 = vpop.f32.mrf.mxu0
  %588 = vmatprep.mubr.f32.mxu0 0.0
  %589 = vmatmul.mubr.f32.gmra.mxu0 %v287
  %v590 = vpop.f32.mrf.mxu0
  %v591 = vadd.f32 0.0, %v590
  %v592 = vpop.f32.mrf.mxu0
  %593 = vmatprep.mubr.f32.mxu0 0.0
  %594 = vmatmul.mubr.f32.gmra.mxu0 %v290
  %v595 = vpop.f32.mrf.mxu0
  %v596 = vadd.f32 0.0, %v595
  %v597 = vpop.f32.mrf.mxu0
  %598 = vmatprep.mubr.f32.mxu0 0.0
  %599 = vmatmul.mubr.f32.gmra.mxu0 %v293
  %v600 = vpop.f32.mrf.mxu0
  %v601 = vadd.f32 0.0, %v600
  %v602 = vpop.f32.mrf.mxu0
  %603 = vmatprep.mubr.f32.mxu0 0.0
  %604 = vmatmul.mubr.f32.gmra.mxu0 %v296
  %v605 = vpop.f32.mrf.mxu0
  %v606 = vadd.f32 0.0, %v605
  %v607 = vpop.f32.mrf.mxu0
  %608 = vmatprep.mubr.f32.mxu0 0.0
  %609 = vmatmul.mubr.f32.gmra.mxu0 %v299
  %v610 = vpop.f32.mrf.mxu0
  %v611 = vadd.f32 0.0, %v610
  %v612 = vpop.f32.mrf.mxu0
  %613 = vmatprep.mubr.f32.mxu0 0.0
  %614 = vmatmul.mubr.f32.gmra.mxu0 %v302
  %v615 = vpop.f32.mrf.mxu0
  %v616 = vadd.f32 0.0, %v615
  %v617 = vpop.f32.mrf.mxu0
  %618 = vmatprep.mubr.f32.mxu0 0.0
  %619 = vmatmul.mubr.f32.gmra.mxu0 %v305
  %v620 = vpop.f32.mrf.mxu0
  %v621 = vadd.f32 0.0, %v620
  %v622 = vpop.f32.mrf.mxu0
  %623 = vmatprep.mubr.f32.mxu0 0.0
  %624 = vmatmul.mubr.f32.gmra.mxu0 %v308
  %v625 = vpop.f32.mrf.mxu0
  %v626 = vadd.f32 0.0, %v625
  %v627 = vpop.f32.mrf.mxu0
  %628 = vmatprep.mubr.f32.mxu0 0.0
  %629 = vmatmul.mubr.f32.gmra.mxu0 %v311
  %v630 = vpop.f32.mrf.mxu0
  %v631 = vadd.f32 0.0, %v630
  %v632 = vpop.f32.mrf.mxu0
  %633 = vmatprep.mubr.f32.mxu0 0.0
  %634 = vmatmul.mubr.f32.gmra.mxu0 %v314
  %v635 = vpop.f32.mrf.mxu0
  %v636 = vadd.f32 0.0, %v635
  %v637 = vpop.f32.mrf.mxu0
  %638 = vmatprep.mubr.f32.mxu0 0.0
  %639 = vmatmul.mubr.f32.gmra.mxu0 %v317
  %v640 = vpop.f32.mrf.mxu0
  %v641 = vadd.f32 0.0, %v640
  %v642 = vpop.f32.mrf.mxu0
  %643 = vmatprep.mubr.f32.mxu0 0.0
  %644 = vmatmul.mubr.f32.gmra.mxu0 %v320
  %v645 = vpop.f32.mrf.mxu0
  %v646 = vadd.f32 0.0, %v645
  %v647 = vpop.f32.mrf.mxu0
  %648 = vmatprep.mubr.f32.mxu0 0.0
  %649 = vmatmul.mubr.f32.gmra.mxu0 %v323
  %v650 = vpop.f32.mrf.mxu0
  %v651 = vadd.f32 0.0, %v650
  %v652 = vpop.f32.mrf.mxu0
  %653 = vmatprep.mubr.f32.mxu0 0.0
  %654 = vmatmul.mubr.f32.gmra.mxu0 %v326
  %v655 = vpop.f32.mrf.mxu0
  %v656 = vadd.f32 0.0, %v655
  %v657 = vpop.f32.mrf.mxu0
  %658 = vmatprep.mubr.f32.mxu0 0.0
  %659 = vmatmul.mubr.f32.gmra.mxu0 %v329
  %v660 = vpop.f32.mrf.mxu0
  %v661 = vadd.f32 0.0, %v660
  %v662 = vpop.f32.mrf.mxu0
  %663 = vmatprep.mubr.f32.mxu0 0.0
  %664 = vmatmul.mubr.f32.gmra.mxu0 %v332
  %v665 = vpop.f32.mrf.mxu0
  %v666 = vadd.f32 0.0, %v665
  %v667 = vpop.f32.mrf.mxu0
  %668 = vmatprep.mubr.f32.mxu0 0.0
  %669 = vmatmul.mubr.f32.gmra.mxu0 %v335
  %v670 = vpop.f32.mrf.mxu0
  %v671 = vadd.f32 0.0, %v670
  %v672 = vpop.f32.mrf.mxu0
  %673 = vmatprep.mubr.f32.mxu0 0.0
  %674 = vmatmul.mubr.f32.gmra.mxu0 %v338
  %v675 = vpop.f32.mrf.mxu0
  %v676 = vadd.f32 0.0, %v675
  %v677 = vpop.f32.mrf.mxu0
  %678 = vmatprep.mubr.f32.mxu0 0.0
  %679 = vmatmul.mubr.f32.gmra.mxu0 %v341
  %v680 = vpop.f32.mrf.mxu0
  %v681 = vadd.f32 0.0, %v680
  %v682 = vpop.f32.mrf.mxu0
  %683 = vmatprep.mubr.f32.mxu0 0.0
  %684 = vmatmul.mubr.f32.gmra.mxu0 %v344
  %v685 = vpop.f32.mrf.mxu0
  %v686 = vadd.f32 0.0, %v685
  %v687 = vpop.f32.mrf.mxu0
  %688 = vmatprep.mubr.f32.mxu0 0.0
  %689 = vmatmul.mubr.f32.gmra.mxu0 %v347
  %v690 = vpop.f32.mrf.mxu0
  %v691 = vadd.f32 0.0, %v690
  %v692 = vpop.f32.mrf.mxu0
  %693 = vmatprep.mubr.f32.mxu0 0.0
  %694 = vmatmul.mubr.f32.gmra.mxu0 %v350
  %v695 = vpop.f32.mrf.mxu0
  %v696 = vadd.f32 0.0, %v695
  %v697 = vpop.f32.mrf.mxu0
  %698 = vmatprep.mubr.f32.mxu0 0.0
  %699 = vmatmul.mubr.f32.gmra.mxu0 %v353
  %v700 = vpop.f32.mrf.mxu0
  %v701 = vadd.f32 0.0, %v700
  %v702 = vpop.f32.mrf.mxu0
  %703 = vmatprep.mubr.f32.mxu0 0.0
  %704 = vmatmul.mubr.f32.gmra.mxu0 %v356
  %v705 = vpop.f32.mrf.mxu0
  %v706 = vadd.f32 0.0, %v705
  %v707 = vpop.f32.mrf.mxu0
  %708 = vmatprep.mubr.f32.mxu0 0.0
  %709 = vmatmul.mubr.f32.gmra.mxu0 %v359
  %v710 = vpop.f32.mrf.mxu0
  %v711 = vadd.f32 0.0, %v710
  %v712 = vpop.f32.mrf.mxu0
  %713 = vmatprep.mubr.f32.mxu0 0.0
  %714 = vmatmul.mubr.f32.gmra.mxu0 %v362
  %v715 = vpop.f32.mrf.mxu0
  %v716 = vadd.f32 0.0, %v715
  %v717 = vpop.f32.mrf.mxu0
  %718 = vmatprep.mubr.f32.mxu0 0.0
  %719 = vmatmul.mubr.f32.gmra.mxu0 %v365
  %v720 = vpop.f32.mrf.mxu0
  %v721 = vadd.f32 0.0, %v720
  %v722 = vpop.f32.mrf.mxu0
  %723 = vmatprep.mubr.f32.mxu0 0.0
  %724 = vmatmul.mubr.f32.gmra.mxu0 %v368
  %v725 = vpop.f32.mrf.mxu0
  %v726 = vadd.f32 0.0, %v725
  %v727 = vpop.f32.mrf.mxu0
  %728 = vmatprep.mubr.f32.mxu0 0.0
  %729 = vmatmul.mubr.f32.gmra.mxu0 %v371
  %v730 = vpop.f32.mrf.mxu0
  %v731 = vadd.f32 0.0, %v730
  %v732 = vpop.f32.mrf.mxu0
  %733 = vmatprep.mubr.f32.mxu0 0.0
  %734 = vmatmul.mubr.f32.gmra.mxu0 %v374
  %v735 = vpop.f32.mrf.mxu0
  %v736 = vadd.f32 0.0, %v735
  %v737 = vpop.f32.mrf.mxu0
  %738 = vmatprep.mubr.f32.mxu0 0.0
  %739 = vmatmul.mubr.f32.gmra.mxu0 %v377
  %v740 = vpop.f32.mrf.mxu0
  %v741 = vadd.f32 0.0, %v740
  %v742 = vpop.f32.mrf.mxu0
  %743 = vmatprep.mubr.f32.mxu0 0.0
  %744 = vmatmul.mubr.f32.gmra.mxu0 %v380
  %v745 = vpop.f32.mrf.mxu0
  %v746 = vadd.f32 0.0, %v745
  %v747 = vpop.f32.mrf.mxu0
  %748 = vmatprep.mubr.f32.mxu0 0.0
  %749 = vmatmul.mubr.f32.gmra.mxu0 %v383
  %v750 = vpop.f32.mrf.mxu0
  %v751 = vadd.f32 0.0, %v750
  %v752 = vpop.f32.mrf.mxu0
  %753 = vmatprep.mubr.f32.mxu0 0.0
  %754 = vmatmul.mubr.f32.gmra.mxu0 %v386
  %v755 = vpop.f32.mrf.mxu0
  %v756 = vadd.f32 0.0, %v755
  %v757 = vpop.f32.mrf.mxu0
  %758 = vmatprep.mubr.f32.mxu0 0.0
  %759 = vmatmul.mubr.f32.gmra.mxu0 %v389
  %v760 = vpop.f32.mrf.mxu0
  %v761 = vadd.f32 0.0, %v760
  %v762 = vpop.f32.mrf.mxu0
  %763 = vmatprep.mubr.f32.mxu0 0.0
  %764 = vmatmul.mubr.f32.gmra.mxu0 %v392
  %v765 = vpop.f32.mrf.mxu0
  %v766 = vadd.f32 0.0, %v765
  %v767 = vpop.f32.mrf.mxu0
  %768 = vmatprep.mubr.f32.mxu0 0.0
  %769 = vmatmul.mubr.f32.gmra.mxu0 %v395
  %v770 = vpop.f32.mrf.mxu0
  %v771 = vadd.f32 0.0, %v770
  %v772 = vpop.f32.mrf.mxu0
  %773 = vmatprep.mubr.f32.mxu0 0.0
  %774 = vmatmul.mubr.f32.gmra.mxu0 %v398
  %v775 = vpop.f32.mrf.mxu0
  %v776 = vadd.f32 0.0, %v775
  %v777 = vpop.f32.mrf.mxu0
  %778 = vmatprep.mubr.f32.mxu0 0.0
  %779 = vmatmul.mubr.f32.gmra.mxu0 %v401
  %v780 = vpop.f32.mrf.mxu0
  %v781 = vadd.f32 0.0, %v780
  %v782 = vpop.f32.mrf.mxu0
  %783 = vmatprep.mubr.f32.mxu0 0.0
  %784 = vmatmul.mubr.f32.gmra.mxu0 %v404
  %v785 = vpop.f32.mrf.mxu0
  %v786 = vadd.f32 0.0, %v785
  %v787 = vpop.f32.mrf.mxu0
  %788 = vmatprep.mubr.f32.mxu0 0.0
  %789 = vmatmul.mubr.f32.gmra.mxu0 %v407
  %v790 = vpop.f32.mrf.mxu0
  %v791 = vadd.f32 0.0, %v790
  %v792 = vpop.f32.mrf.mxu0
  %793 = vmatprep.mubr.f32.mxu0 0.0
  %794 = vmatmul.mubr.f32.gmra.mxu0 %v410
  %v795 = vpop.f32.mrf.mxu0
  %v796 = vadd.f32 0.0, %v795
  %v797 = vpop.f32.mrf.mxu0
  %798 = vmatprep.mubr.f32.mxu0 0.0
  %799 = vmatmul.mubr.f32.gmra.mxu0 %v413
  %v800 = vpop.f32.mrf.mxu0
  %v801 = vadd.f32 0.0, %v800
  %v802 = vpop.f32.mrf.mxu0
  %803 = vdwg.mxu0
  %v804 = vadd.f32 %v89, %v486
  %v805 = vadd.f32 %v90, %v491
  %v806 = vadd.f32 %v91, %v496
  %v807 = vadd.f32 %v92, %v501
  %v808 = vadd.f32 %v93, %v506
  %v809 = vadd.f32 %v94, %v511
  %v810 = vadd.f32 %v95, %v516
  %v811 = vadd.f32 %v96, %v521
  %v812 = vadd.f32 %v97, %v526
  %v813 = vadd.f32 %v98, %v531
  %v814 = vadd.f32 %v99, %v536
  %v815 = vadd.f32 %v100, %v541
  %v816 = vadd.f32 %v101, %v546
  %v817 = vadd.f32 %v102, %v551
  %v818 = vadd.f32 %v103, %v556
  %v819 = vadd.f32 %v104, %v561
  %v820 = vadd.f32 %v105, %v566
  %v821 = vadd.f32 %v106, %v571
  %v822 = vadd.f32 %v107, %v576
  %v823 = vadd.f32 %v108, %v581
  %v824 = vadd.f32 %v109, %v586
  %v825 = vadd.f32 %v110, %v591
  %v826 = vadd.f32 %v111, %v596
  %v827 = vadd.f32 %v112, %v601
  %v828 = vadd.f32 %v113, %v606
  %v829 = vadd.f32 %v114, %v611
  %v830 = vadd.f32 %v115, %v616
  %v831 = vadd.f32 %v116, %v621
  %v832 = vadd.f32 %v117, %v626
  %v833 = vadd.f32 %v118, %v631
  %v834 = vadd.f32 %v119, %v636
  %v835 = vadd.f32 %v120, %v641
  %v836 = vadd.f32 %v121, %v646
  %v837 = vadd.f32 %v122, %v651
  %v838 = vadd.f32 %v123, %v656
  %v839 = vadd.f32 %v124, %v661
  %v840 = vadd.f32 %v125, %v666
  %v841 = vadd.f32 %v126, %v671
  %v842 = vadd.f32 %v127, %v676
  %v843 = vadd.f32 %v128, %v681
  %v844 = vadd.f32 %v129, %v686
  %v845 = vadd.f32 %v130, %v691
  %v846 = vadd.f32 %v131, %v696
  %v847 = vadd.f32 %v132, %v701
  %v848 = vadd.f32 %v133, %v706
  %v849 = vadd.f32 %v134, %v711
  %v850 = vadd.f32 %v135, %v716
  %v851 = vadd.f32 %v136, %v721
  %v852 = vadd.f32 %v137, %v726
  %v853 = vadd.f32 %v138, %v731
  %v854 = vadd.f32 %v139, %v736
  %v855 = vadd.f32 %v140, %v741
  %v856 = vadd.f32 %v141, %v746
  %v857 = vadd.f32 %v142, %v751
  %v858 = vadd.f32 %v143, %v756
  %v859 = vadd.f32 %v144, %v761
  %v860 = vadd.f32 %v145, %v766
  %v861 = vadd.f32 %v146, %v771
  %v862 = vadd.f32 %v147, %v776
  %v863 = vadd.f32 %v148, %v781
  %v864 = vadd.f32 %v149, %v786
  %v865 = vadd.f32 %v150, %v791
  %v866 = vadd.f32 %v151, %v796
  %v867 = vadd.f32 %v152, %v801
  %vm868 = vcmask 31744
  %869 = vst.msk [vmem:[#allocation2] sm:$0xff] %vm868, %v804
  %870 = vst.msk [vmem:[#allocation2 + $0x8] sm:$0xff] %vm868, %v805
  %871 = vst.msk [vmem:[#allocation2 + $0x10] sm:$0xff] %vm868, %v806
  %872 = vst.msk [vmem:[#allocation2 + $0x18] sm:$0xff] %vm868, %v807
  %873 = vst.msk [vmem:[#allocation2 + $0x20] sm:$0xff] %vm868, %v808
  %874 = vst.msk [vmem:[#allocation2 + $0x28] sm:$0xff] %vm868, %v809
  %875 = vst.msk [vmem:[#allocation2 + $0x30] sm:$0xff] %vm868, %v810
  %876 = vst.msk [vmem:[#allocation2 + $0x38] sm:$0xff] %vm868, %v811
  %877 = vst.msk [vmem:[#allocation2 + $0x40] sm:$0xff] %vm868, %v812
  %878 = vst.msk [vmem:[#allocation2 + $0x48] sm:$0xff] %vm868, %v813
  %879 = vst.msk [vmem:[#allocation2 + $0x50] sm:$0xff] %vm868, %v814
  %880 = vst.msk [vmem:[#allocation2 + $0x58] sm:$0xff] %vm868, %v815
  %881 = vst.msk [vmem:[#allocation2 + $0x60] sm:$0xff] %vm868, %v816
  %882 = vst.msk [vmem:[#allocation2 + $0x68] sm:$0xff] %vm868, %v817
  %883 = vst.msk [vmem:[#allocation2 + $0x70] sm:$0xff] %vm868, %v818
  %884 = vst.msk [vmem:[#allocation2 + $0x78] sm:$0xff] %vm868, %v819
  %885 = vst.msk [vmem:[#allocation2 + $0x80] sm:$0xff] %vm868, %v820
  %886 = vst.msk [vmem:[#allocation2 + $0x88] sm:$0xff] %vm868, %v821
  %887 = vst.msk [vmem:[#allocation2 + $0x90] sm:$0xff] %vm868, %v822
  %888 = vst.msk [vmem:[#allocation2 + $0x98] sm:$0xff] %vm868, %v823
  %889 = vst.msk [vmem:[#allocation2 + $0xa0] sm:$0xff] %vm868, %v824
  %890 = vst.msk [vmem:[#allocation2 + $0xa8] sm:$0xff] %vm868, %v825
  %891 = vst.msk [vmem:[#allocation2 + $0xb0] sm:$0xff] %vm868, %v826
  %892 = vst.msk [vmem:[#allocation2 + $0xb8] sm:$0xff] %vm868, %v827
  %893 = vst.msk [vmem:[#allocation2 + $0xc0] sm:$0xff] %vm868, %v828
  %894 = vst.msk [vmem:[#allocation2 + $0xc8] sm:$0xff] %vm868, %v829
  %895 = vst.msk [vmem:[#allocation2 + $0xd0] sm:$0xff] %vm868, %v830
  %896 = vst.msk [vmem:[#allocation2 + $0xd8] sm:$0xff] %vm868, %v831
  %897 = vst.msk [vmem:[#allocation2 + $0xe0] sm:$0xff] %vm868, %v832
  %898 = vst.msk [vmem:[#allocation2 + $0xe8] sm:$0xff] %vm868, %v833
  %899 = vst.msk [vmem:[#allocation2 + $0xf0] sm:$0xff] %vm868, %v834
  %900 = vst.msk [vmem:[#allocation2 + $0xf8] sm:$0xff] %vm868, %v835
  %901 = vst.msk [vmem:[#allocation2 + $0x100] sm:$0xff] %vm868, %v836
  %902 = vst.msk [vmem:[#allocation2 + $0x108] sm:$0xff] %vm868, %v837
  %903 = vst.msk [vmem:[#allocation2 + $0x110] sm:$0xff] %vm868, %v838
  %904 = vst.msk [vmem:[#allocation2 + $0x118] sm:$0xff] %vm868, %v839
  %905 = vst.msk [vmem:[#allocation2 + $0x120] sm:$0xff] %vm868, %v840
  %906 = vst.msk [vmem:[#allocation2 + $0x128] sm:$0xff] %vm868, %v841
  %907 = vst.msk [vmem:[#allocation2 + $0x130] sm:$0xff] %vm868, %v842
  %908 = vst.msk [vmem:[#allocation2 + $0x138] sm:$0xff] %vm868, %v843
  %909 = vst.msk [vmem:[#allocation2 + $0x140] sm:$0xff] %vm868, %v844
  %910 = vst.msk [vmem:[#allocation2 + $0x148] sm:$0xff] %vm868, %v845
  %911 = vst.msk [vmem:[#allocation2 + $0x150] sm:$0xff] %vm868, %v846
  %912 = vst.msk [vmem:[#allocation2 + $0x158] sm:$0xff] %vm868, %v847
  %913 = vst.msk [vmem:[#allocation2 + $0x160] sm:$0xff] %vm868, %v848
  %914 = vst.msk [vmem:[#allocation2 + $0x168] sm:$0xff] %vm868, %v849
  %915 = vst.msk [vmem:[#allocation2 + $0x170] sm:$0xff] %vm868, %v850
  %916 = vst.msk [vmem:[#allocation2 + $0x178] sm:$0xff] %vm868, %v851
  %917 = vst.msk [vmem:[#allocation2 + $0x180] sm:$0xff] %vm868, %v852
  %918 = vst.msk [vmem:[#allocation2 + $0x188] sm:$0xff] %vm868, %v853
  %919 = vst.msk [vmem:[#allocation2 + $0x190] sm:$0xff] %vm868, %v854
  %920 = vst.msk [vmem:[#allocation2 + $0x198] sm:$0xff] %vm868, %v855
  %921 = vst.msk [vmem:[#allocation2 + $0x1a0] sm:$0xff] %vm868, %v856
  %922 = vst.msk [vmem:[#allocation2 + $0x1a8] sm:$0xff] %vm868, %v857
  %923 = vst.msk [vmem:[#allocation2 + $0x1b0] sm:$0xff] %vm868, %v858
  %924 = vst.msk [vmem:[#allocation2 + $0x1b8] sm:$0xff] %vm868, %v859
  %925 = vst.msk [vmem:[#allocation2 + $0x1c0] sm:$0xff] %vm868, %v860
  %926 = vst.msk [vmem:[#allocation2 + $0x1c8] sm:$0xff] %vm868, %v861
  %927 = vst.msk [vmem:[#allocation2 + $0x1d0] sm:$0xff] %vm868, %v862
  %928 = vst.msk [vmem:[#allocation2 + $0x1d8] sm:$0xff] %vm868, %v863
  %929 = vst.msk [vmem:[#allocation2 + $0x1e0] sm:$0xff] %vm868, %v864
  %930 = vst.msk [vmem:[#allocation2 + $0x1e8] sm:$0xff] %vm868, %v865
  %931 = vst.msk [vmem:[#allocation2 + $0x1f0] sm:$0xff] %vm868, %v866
  %932 = vst.msk [vmem:[#allocation2 + $0x1f8] sm:$0xff] %vm868, %v867
  // Predicated region
  $region26: #{styled_conv_block.6} parent=0 // pred_check
    %p933 = pneg %p20
  $region27: #{styled_conv_block.6} parent=0 // pred_check_branch
    %935 = sbr.rel (%p933) target = $region29
  $region28: #{styled_conv_block.6} parent=0 // pred_region
    %v936 = vld [vmem:[#allocation2] sm:$0xff]
    %v937 = vld [vmem:[#allocation2 + $0x8] sm:$0xff]
    %v938 = vld [vmem:[#allocation2 + $0x10] sm:$0xff]
    %v939 = vld [vmem:[#allocation2 + $0x18] sm:$0xff]
    %v940 = vld [vmem:[#allocation2 + $0x20] sm:$0xff]
    %v941 = vld [vmem:[#allocation2 + $0x28] sm:$0xff]
    %v942 = vld [vmem:[#allocation2 + $0x30] sm:$0xff]
    %v943 = vld [vmem:[#allocation2 + $0x38] sm:$0xff]
    %v944 = vld [vmem:[#allocation2 + $0x40] sm:$0xff]
    %v945 = vld [vmem:[#allocation2 + $0x48] sm:$0xff]
    %v946 = vld [vmem:[#allocation2 + $0x50] sm:$0xff]
    %v947 = vld [vmem:[#allocation2 + $0x58] sm:$0xff]
    %v948 = vld [vmem:[#allocation2 + $0x60] sm:$0xff]
    %v949 = vld [vmem:[#allocation2 + $0x68] sm:$0xff]
    %v950 = vld [vmem:[#allocation2 + $0x70] sm:$0xff]
    %v951 = vld [vmem:[#allocation2 + $0x78] sm:$0xff]
    %v952 = vld [vmem:[#allocation2 + $0x80] sm:$0xff]
    %v953 = vld [vmem:[#allocation2 + $0x88] sm:$0xff]
    %v954 = vld [vmem:[#allocation2 + $0x90] sm:$0xff]
    %v955 = vld [vmem:[#allocation2 + $0x98] sm:$0xff]
    %v956 = vld [vmem:[#allocation2 + $0xa0] sm:$0xff]
    %v957 = vld [vmem:[#allocation2 + $0xa8] sm:$0xff]
    %v958 = vld [vmem:[#allocation2 + $0xb0] sm:$0xff]
    %v959 = vld [vmem:[#allocation2 + $0xb8] sm:$0xff]
    %v960 = vld [vmem:[#allocation2 + $0xc0] sm:$0xff]
    %v961 = vld [vmem:[#allocation2 + $0xc8] sm:$0xff]
    %v962 = vld [vmem:[#allocation2 + $0xd0] sm:$0xff]
    %v963 = vld [vmem:[#allocation2 + $0xd8] sm:$0xff]
    %v964 = vld [vmem:[#allocation2 + $0xe0] sm:$0xff]
    %v965 = vld [vmem:[#allocation2 + $0xe8] sm:$0xff]
    %v966 = vld [vmem:[#allocation2 + $0xf0] sm:$0xff]
    %v967 = vld [vmem:[#allocation2 + $0xf8] sm:$0xff]
    %v968 = vld [vmem:[#allocation2 + $0x100] sm:$0xff]
    %v969 = vld [vmem:[#allocation2 + $0x108] sm:$0xff]
    %v970 = vld [vmem:[#allocation2 + $0x110] sm:$0xff]
    %v971 = vld [vmem:[#allocation2 + $0x118] sm:$0xff]
    %v972 = vld [vmem:[#allocation2 + $0x120] sm:$0xff]
    %v973 = vld [vmem:[#allocation2 + $0x128] sm:$0xff]
    %v974 = vld [vmem:[#allocation2 + $0x130] sm:$0xff]
    %v975 = vld [vmem:[#allocation2 + $0x138] sm:$0xff]
    %v976 = vld [vmem:[#allocation2 + $0x140] sm:$0xff]
    %v977 = vld [vmem:[#allocation2 + $0x148] sm:$0xff]
    %v978 = vld [vmem:[#allocation2 + $0x150] sm:$0xff]
    %v979 = vld [vmem:[#allocation2 + $0x158] sm:$0xff]
    %v980 = vld [vmem:[#allocation2 + $0x160] sm:$0xff]
    %v981 = vld [vmem:[#allocation2 + $0x168] sm:$0xff]
    %v982 = vld [vmem:[#allocation2 + $0x170] sm:$0xff]
    %v983 = vld [vmem:[#allocation2 + $0x178] sm:$0xff]
    %v984 = vld [vmem:[#allocation2 + $0x180] sm:$0xff]
    %v985 = vld [vmem:[#allocation2 + $0x188] sm:$0xff]
    %v986 = vld [vmem:[#allocation2 + $0x190] sm:$0xff]
    %v987 = vld [vmem:[#allocation2 + $0x198] sm:$0xff]
    %v988 = vld [vmem:[#allocation2 + $0x1a0] sm:$0xff]
    %v989 = vld [vmem:[#allocation2 + $0x1a8] sm:$0xff]
    %v990 = vld [vmem:[#allocation2 + $0x1b0] sm:$0xff]
    %v991 = vld [vmem:[#allocation2 + $0x1b8] sm:$0xff]
    %v992 = vld [vmem:[#allocation2 + $0x1c0] sm:$0xff]
    %v993 = vld [vmem:[#allocation2 + $0x1c8] sm:$0xff]
    %v994 = vld [vmem:[#allocation2 + $0x1d0] sm:$0xff]
    %v995 = vld [vmem:[#allocation2 + $0x1d8] sm:$0xff]
    %v996 = vld [vmem:[#allocation2 + $0x1e0] sm:$0xff]
    %v997 = vld [vmem:[#allocation2 + $0x1e8] sm:$0xff]
    %v998 = vld [vmem:[#allocation2 + $0x1f0] sm:$0xff]
    %v999 = vld [vmem:[#allocation2 + $0x1f8] sm:$0xff]
    %v1000 = vld [vmem:[%s2] sm:$0x1]
    %v1002 = vlaneseq
    %v1003 = vshrl.u32 %v1002, 7
    %v1004 = vsub.s32 0, %v1003
    %v1005 = vrot.slane %v1000, %v1004
    %v1007 = vadd.f32 %v936, %v1005
    %v1008 = vadd.f32 %v937, %v1005
    %v1009 = vadd.f32 %v938, %v1005
    %v1010 = vadd.f32 %v939, %v1005
    %v1011 = vadd.f32 %v940, %v1005
    %v1012 = vadd.f32 %v941, %v1005
    %v1013 = vadd.f32 %v942, %v1005
    %v1014 = vadd.f32 %v943, %v1005
    %v1015 = vadd.f32 %v944, %v1005
    %v1016 = vadd.f32 %v945, %v1005
    %v1017 = vadd.f32 %v946, %v1005
    %v1018 = vadd.f32 %v947, %v1005
    %v1019 = vadd.f32 %v948, %v1005
    %v1020 = vadd.f32 %v949, %v1005
    %v1021 = vadd.f32 %v950, %v1005
    %v1022 = vadd.f32 %v951, %v1005
    %v1023 = vadd.f32 %v952, %v1005
    %v1024 = vadd.f32 %v953, %v1005
    %v1025 = vadd.f32 %v954, %v1005
    %v1026 = vadd.f32 %v955, %v1005
    %v1027 = vadd.f32 %v956, %v1005
    %v1028 = vadd.f32 %v957, %v1005
    %v1029 = vadd.f32 %v958, %v1005
    %v1030 = vadd.f32 %v959, %v1005
    %v1031 = vadd.f32 %v960, %v1005
    %v1032 = vadd.f32 %v961, %v1005
    %v1033 = vadd.f32 %v962, %v1005
    %v1034 = vadd.f32 %v963, %v1005
    %v1035 = vadd.f32 %v964, %v1005
    %v1036 = vadd.f32 %v965, %v1005
    %v1037 = vadd.f32 %v966, %v1005
    %v1038 = vadd.f32 %v967, %v1005
    %v1039 = vadd.f32 %v968, %v1005
    %v1040 = vadd.f32 %v969, %v1005
    %v1041 = vadd.f32 %v970, %v1005
    %v1042 = vadd.f32 %v971, %v1005
    %v1043 = vadd.f32 %v972, %v1005
    %v1044 = vadd.f32 %v973, %v1005
    %v1045 = vadd.f32 %v974, %v1005
    %v1046 = vadd.f32 %v975, %v1005
    %v1047 = vadd.f32 %v976, %v1005
    %v1048 = vadd.f32 %v977, %v1005
    %v1049 = vadd.f32 %v978, %v1005
    %v1050 = vadd.f32 %v979, %v1005
    %v1051 = vadd.f32 %v980, %v1005
    %v1052 = vadd.f32 %v981, %v1005
    %v1053 = vadd.f32 %v982, %v1005
    %v1054 = vadd.f32 %v983, %v1005
    %v1055 = vadd.f32 %v984, %v1005
    %v1056 = vadd.f32 %v985, %v1005
    %v1057 = vadd.f32 %v986, %v1005
    %v1058 = vadd.f32 %v987, %v1005
    %v1059 = vadd.f32 %v988, %v1005
    %v1060 = vadd.f32 %v989, %v1005
    %v1061 = vadd.f32 %v990, %v1005
    %v1062 = vadd.f32 %v991, %v1005
    %v1063 = vadd.f32 %v992, %v1005
    %v1064 = vadd.f32 %v993, %v1005
    %v1065 = vadd.f32 %v994, %v1005
    %v1066 = vadd.f32 %v995, %v1005
    %v1067 = vadd.f32 %v996, %v1005
    %v1068 = vadd.f32 %v997, %v1005
    %v1069 = vadd.f32 %v998, %v1005
    %v1070 = vadd.f32 %v999, %v1005
    %v1071 = vld [vmem:[%s3] sm:$0xff]
    %v1072 = vld [vmem:[%s3 + $0x8] sm:$0xff]
    %v1073 = vld [vmem:[%s3 + $0x10] sm:$0xff]
    %v1074 = vld [vmem:[%s3 + $0x18] sm:$0xff]
    %v1075 = vld [vmem:[%s3 + $0x20] sm:$0xff]
    %v1076 = vld [vmem:[%s3 + $0x28] sm:$0xff]
    %v1077 = vld [vmem:[%s3 + $0x30] sm:$0xff]
    %v1078 = vld [vmem:[%s3 + $0x38] sm:$0xff]
    %v1079 = vld [vmem:[%s3 + $0x40] sm:$0xff]
    %v1080 = vld [vmem:[%s3 + $0x48] sm:$0xff]
    %v1081 = vld [vmem:[%s3 + $0x50] sm:$0xff]
    %v1082 = vld [vmem:[%s3 + $0x58] sm:$0xff]
    %v1083 = vld [vmem:[%s3 + $0x60] sm:$0xff]
    %v1084 = vld [vmem:[%s3 + $0x68] sm:$0xff]
    %v1085 = vld [vmem:[%s3 + $0x70] sm:$0xff]
    %v1086 = vld [vmem:[%s3 + $0x78] sm:$0xff]
    %v1087 = vld [vmem:[%s3 + $0x80] sm:$0xff]
    %v1088 = vld [vmem:[%s3 + $0x88] sm:$0xff]
    %v1089 = vld [vmem:[%s3 + $0x90] sm:$0xff]
    %v1090 = vld [vmem:[%s3 + $0x98] sm:$0xff]
    %v1091 = vld [vmem:[%s3 + $0xa0] sm:$0xff]
    %v1092 = vld [vmem:[%s3 + $0xa8] sm:$0xff]
    %v1093 = vld [vmem:[%s3 + $0xb0] sm:$0xff]
    %v1094 = vld [vmem:[%s3 + $0xb8] sm:$0xff]
    %v1095 = vld [vmem:[%s3 + $0xc0] sm:$0xff]
    %v1096 = vld [vmem:[%s3 + $0xc8] sm:$0xff]
    %v1097 = vld [vmem:[%s3 + $0xd0] sm:$0xff]
    %v1098 = vld [vmem:[%s3 + $0xd8] sm:$0xff]
    %v1099 = vld [vmem:[%s3 + $0xe0] sm:$0xff]
    %v1100 = vld [vmem:[%s3 + $0xe8] sm:$0xff]
    %v1101 = vld [vmem:[%s3 + $0xf0] sm:$0xff]
    %v1102 = vld [vmem:[%s3 + $0xf8] sm:$0xff]
    %v1103 = vld [vmem:[%s3 + $0x100] sm:$0xff]
    %v1104 = vld [vmem:[%s3 + $0x108] sm:$0xff]
    %v1105 = vld [vmem:[%s3 + $0x110] sm:$0xff]
    %v1106 = vld [vmem:[%s3 + $0x118] sm:$0xff]
    %v1107 = vld [vmem:[%s3 + $0x120] sm:$0xff]
    %v1108 = vld [vmem:[%s3 + $0x128] sm:$0xff]
    %v1109 = vld [vmem:[%s3 + $0x130] sm:$0xff]
    %v1110 = vld [vmem:[%s3 + $0x138] sm:$0xff]
    %v1111 = vld [vmem:[%s3 + $0x140] sm:$0xff]
    %v1112 = vld [vmem:[%s3 + $0x148] sm:$0xff]
    %v1113 = vld [vmem:[%s3 + $0x150] sm:$0xff]
    %v1114 = vld [vmem:[%s3 + $0x158] sm:$0xff]
    %v1115 = vld [vmem:[%s3 + $0x160] sm:$0xff]
    %v1116 = vld [vmem:[%s3 + $0x168] sm:$0xff]
    %v1117 = vld [vmem:[%s3 + $0x170] sm:$0xff]
    %v1118 = vld [vmem:[%s3 + $0x178] sm:$0xff]
    %v1119 = vld [vmem:[%s3 + $0x180] sm:$0xff]
    %v1120 = vld [vmem:[%s3 + $0x188] sm:$0xff]
    %v1121 = vld [vmem:[%s3 + $0x190] sm:$0xff]
    %v1122 = vld [vmem:[%s3 + $0x198] sm:$0xff]
    %v1123 = vld [vmem:[%s3 + $0x1a0] sm:$0xff]
    %v1124 = vld [vmem:[%s3 + $0x1a8] sm:$0xff]
    %v1125 = vld [vmem:[%s3 + $0x1b0] sm:$0xff]
    %v1126 = vld [vmem:[%s3 + $0x1b8] sm:$0xff]
    %v1127 = vld [vmem:[%s3 + $0x1c0] sm:$0xff]
    %v1128 = vld [vmem:[%s3 + $0x1c8] sm:$0xff]
    %v1129 = vld [vmem:[%s3 + $0x1d0] sm:$0xff]
    %v1130 = vld [vmem:[%s3 + $0x1d8] sm:$0xff]
    %v1131 = vld [vmem:[%s3 + $0x1e0] sm:$0xff]
    %v1132 = vld [vmem:[%s3 + $0x1e8] sm:$0xff]
    %v1133 = vld [vmem:[%s3 + $0x1f0] sm:$0xff]
    %v1134 = vld [vmem:[%s3 + $0x1f8] sm:$0xff]
    %v1135 = vld [vmem:[%s4] sm:$0x1]
    %1137 = vset.pattern.permute.xlu0 0
    %1138 = vperm.xlu0 %1137, %v1071
    %v1139 = vpop.permute.xlu0 %1138
    %1142 = vset.pattern.permute.xlu0 0
    %1143 = vperm.xlu0 %1142, %v1072
    %v1144 = vpop.permute.xlu0 %1143
    %1147 = vset.pattern.permute.xlu0 0
    %1148 = vperm.xlu0 %1147, %v1073
    %v1149 = vpop.permute.xlu0 %1148
    %1152 = vset.pattern.permute.xlu0 0
    %1153 = vperm.xlu0 %1152, %v1074
    %v1154 = vpop.permute.xlu0 %1153
    %1157 = vset.pattern.permute.xlu0 0
    %1158 = vperm.xlu0 %1157, %v1075
    %v1159 = vpop.permute.xlu0 %1158
    %1162 = vset.pattern.permute.xlu0 0
    %1163 = vperm.xlu0 %1162, %v1076
    %v1164 = vpop.permute.xlu0 %1163
    %1167 = vset.pattern.permute.xlu0 0
    %1168 = vperm.xlu0 %1167, %v1077
    %v1169 = vpop.permute.xlu0 %1168
    %1172 = vset.pattern.permute.xlu0 0
    %1173 = vperm.xlu0 %1172, %v1078
    %v1174 = vpop.permute.xlu0 %1173
    %1177 = vset.pattern.permute.xlu0 0
    %1178 = vperm.xlu0 %1177, %v1079
    %v1179 = vpop.permute.xlu0 %1178
    %1182 = vset.pattern.permute.xlu0 0
    %1183 = vperm.xlu0 %1182, %v1080
    %v1184 = vpop.permute.xlu0 %1183
    %1187 = vset.pattern.permute.xlu0 0
    %1188 = vperm.xlu0 %1187, %v1081
    %v1189 = vpop.permute.xlu0 %1188
    %1192 = vset.pattern.permute.xlu0 0
    %1193 = vperm.xlu0 %1192, %v1082
    %v1194 = vpop.permute.xlu0 %1193
    %1197 = vset.pattern.permute.xlu0 0
    %1198 = vperm.xlu0 %1197, %v1083
    %v1199 = vpop.permute.xlu0 %1198
    %1202 = vset.pattern.permute.xlu0 0
    %1203 = vperm.xlu0 %1202, %v1084
    %v1204 = vpop.permute.xlu0 %1203
    %1207 = vset.pattern.permute.xlu0 0
    %1208 = vperm.xlu0 %1207, %v1085
    %v1209 = vpop.permute.xlu0 %1208
    %1212 = vset.pattern.permute.xlu0 0
    %1213 = vperm.xlu0 %1212, %v1086
    %v1214 = vpop.permute.xlu0 %1213
    %1217 = vset.pattern.permute.xlu0 0
    %1218 = vperm.xlu0 %1217, %v1087
    %v1219 = vpop.permute.xlu0 %1218
    %1222 = vset.pattern.permute.xlu0 0
    %1223 = vperm.xlu0 %1222, %v1088
    %v1224 = vpop.permute.xlu0 %1223
    %1227 = vset.pattern.permute.xlu0 0
    %1228 = vperm.xlu0 %1227, %v1089
    %v1229 = vpop.permute.xlu0 %1228
    %1232 = vset.pattern.permute.xlu0 0
    %1233 = vperm.xlu0 %1232, %v1090
    %v1234 = vpop.permute.xlu0 %1233
    %1237 = vset.pattern.permute.xlu0 0
    %1238 = vperm.xlu0 %1237, %v1091
    %v1239 = vpop.permute.xlu0 %1238
    %1242 = vset.pattern.permute.xlu0 0
    %1243 = vperm.xlu0 %1242, %v1092
    %v1244 = vpop.permute.xlu0 %1243
    %1247 = vset.pattern.permute.xlu0 0
    %1248 = vperm.xlu0 %1247, %v1093
    %v1249 = vpop.permute.xlu0 %1248
    %1252 = vset.pattern.permute.xlu0 0
    %1253 = vperm.xlu0 %1252, %v1094
    %v1254 = vpop.permute.xlu0 %1253
    %1257 = vset.pattern.permute.xlu0 0
    %1258 = vperm.xlu0 %1257, %v1095
    %v1259 = vpop.permute.xlu0 %1258
    %1262 = vset.pattern.permute.xlu0 0
    %1263 = vperm.xlu0 %1262, %v1096
    %v1264 = vpop.permute.xlu0 %1263
    %1267 = vset.pattern.permute.xlu0 0
    %1268 = vperm.xlu0 %1267, %v1097
    %v1269 = vpop.permute.xlu0 %1268
    %1272 = vset.pattern.permute.xlu0 0
    %1273 = vperm.xlu0 %1272, %v1098
    %v1274 = vpop.permute.xlu0 %1273
    %1277 = vset.pattern.permute.xlu0 0
    %1278 = vperm.xlu0 %1277, %v1099
    %v1279 = vpop.permute.xlu0 %1278
    %1282 = vset.pattern.permute.xlu0 0
    %1283 = vperm.xlu0 %1282, %v1100
    %v1284 = vpop.permute.xlu0 %1283
    %1287 = vset.pattern.permute.xlu0 0
    %1288 = vperm.xlu0 %1287, %v1101
    %v1289 = vpop.permute.xlu0 %1288
    %1292 = vset.pattern.permute.xlu0 0
    %1293 = vperm.xlu0 %1292, %v1102
    %v1294 = vpop.permute.xlu0 %1293
    %1297 = vset.pattern.permute.xlu0 0
    %1298 = vperm.xlu0 %1297, %v1103
    %v1299 = vpop.permute.xlu0 %1298
    %1302 = vset.pattern.permute.xlu0 0
    %1303 = vperm.xlu0 %1302, %v1104
    %v1304 = vpop.permute.xlu0 %1303
    %1307 = vset.pattern.permute.xlu0 0
    %1308 = vperm.xlu0 %1307, %v1105
    %v1309 = vpop.permute.xlu0 %1308
    %1312 = vset.pattern.permute.xlu0 0
    %1313 = vperm.xlu0 %1312, %v1106
    %v1314 = vpop.permute.xlu0 %1313
    %1317 = vset.pattern.permute.xlu0 0
    %1318 = vperm.xlu0 %1317, %v1107
    %v1319 = vpop.permute.xlu0 %1318
    %1322 = vset.pattern.permute.xlu0 0
    %1323 = vperm.xlu0 %1322, %v1108
    %v1324 = vpop.permute.xlu0 %1323
    %1327 = vset.pattern.permute.xlu0 0
    %1328 = vperm.xlu0 %1327, %v1109
    %v1329 = vpop.permute.xlu0 %1328
    %1332 = vset.pattern.permute.xlu0 0
    %1333 = vperm.xlu0 %1332, %v1110
    %v1334 = vpop.permute.xlu0 %1333
    %1337 = vset.pattern.permute.xlu0 0
    %1338 = vperm.xlu0 %1337, %v1111
    %v1339 = vpop.permute.xlu0 %1338
    %1342 = vset.pattern.permute.xlu0 0
    %1343 = vperm.xlu0 %1342, %v1112
    %v1344 = vpop.permute.xlu0 %1343
    %1347 = vset.pattern.permute.xlu0 0
    %1348 = vperm.xlu0 %1347, %v1113
    %v1349 = vpop.permute.xlu0 %1348
    %1352 = vset.pattern.permute.xlu0 0
    %1353 = vperm.xlu0 %1352, %v1114
    %v1354 = vpop.permute.xlu0 %1353
    %1357 = vset.pattern.permute.xlu0 0
    %1358 = vperm.xlu0 %1357, %v1115
    %v1359 = vpop.permute.xlu0 %1358
    %1362 = vset.pattern.permute.xlu0 0
    %1363 = vperm.xlu0 %1362, %v1116
    %v1364 = vpop.permute.xlu0 %1363
    %1367 = vset.pattern.permute.xlu0 0
    %1368 = vperm.xlu0 %1367, %v1117
    %v1369 = vpop.permute.xlu0 %1368
    %1372 = vset.pattern.permute.xlu0 0
    %1373 = vperm.xlu0 %1372, %v1118
    %v1374 = vpop.permute.xlu0 %1373
    %1377 = vset.pattern.permute.xlu0 0
    %1378 = vperm.xlu0 %1377, %v1119
    %v1379 = vpop.permute.xlu0 %1378
    %1382 = vset.pattern.permute.xlu0 0
    %1383 = vperm.xlu0 %1382, %v1120
    %v1384 = vpop.permute.xlu0 %1383
    %1387 = vset.pattern.permute.xlu0 0
    %1388 = vperm.xlu0 %1387, %v1121
    %v1389 = vpop.permute.xlu0 %1388
    %1392 = vset.pattern.permute.xlu0 0
    %1393 = vperm.xlu0 %1392, %v1122
    %v1394 = vpop.permute.xlu0 %1393
    %1397 = vset.pattern.permute.xlu0 0
    %1398 = vperm.xlu0 %1397, %v1123
    %v1399 = vpop.permute.xlu0 %1398
    %1402 = vset.pattern.permute.xlu0 0
    %1403 = vperm.xlu0 %1402, %v1124
    %v1404 = vpop.permute.xlu0 %1403
    %1407 = vset.pattern.permute.xlu0 0
    %1408 = vperm.xlu0 %1407, %v1125
    %v1409 = vpop.permute.xlu0 %1408
    %1412 = vset.pattern.permute.xlu0 0
    %1413 = vperm.xlu0 %1412, %v1126
    %v1414 = vpop.permute.xlu0 %1413
    %1417 = vset.pattern.permute.xlu0 0
    %1418 = vperm.xlu0 %1417, %v1127
    %v1419 = vpop.permute.xlu0 %1418
    %1422 = vset.pattern.permute.xlu0 0
    %1423 = vperm.xlu0 %1422, %v1128
    %v1424 = vpop.permute.xlu0 %1423
    %1427 = vset.pattern.permute.xlu0 0
    %1428 = vperm.xlu0 %1427, %v1129
    %v1429 = vpop.permute.xlu0 %1428
    %1432 = vset.pattern.permute.xlu0 0
    %1433 = vperm.xlu0 %1432, %v1130
    %v1434 = vpop.permute.xlu0 %1433
    %1437 = vset.pattern.permute.xlu0 0
    %1438 = vperm.xlu0 %1437, %v1131
    %v1439 = vpop.permute.xlu0 %1438
    %1442 = vset.pattern.permute.xlu0 0
    %1443 = vperm.xlu0 %1442, %v1132
    %v1444 = vpop.permute.xlu0 %1443
    %1447 = vset.pattern.permute.xlu0 0
    %1448 = vperm.xlu0 %1447, %v1133
    %v1449 = vpop.permute.xlu0 %1448
    %1452 = vset.pattern.permute.xlu0 0
    %1453 = vperm.xlu0 %1452, %v1134
    %v1454 = vpop.permute.xlu0 %1453
    %v1457 = vlaneseq
    %v1458 = vshrl.u32 %v1457, 7
    %v1459 = vsub.s32 0, %v1458
    %v1460 = vrot.slane %v1135, %v1459
    %v1462 = vmul.f32 %v1139, %v1460
    %v1463 = vmul.f32 %v1144, %v1460
    %v1464 = vmul.f32 %v1149, %v1460
    %v1465 = vmul.f32 %v1154, %v1460
    %v1466 = vmul.f32 %v1159, %v1460
    %v1467 = vmul.f32 %v1164, %v1460
    %v1468 = vmul.f32 %v1169, %v1460
    %v1469 = vmul.f32 %v1174, %v1460
    %v1470 = vmul.f32 %v1179, %v1460
    %v1471 = vmul.f32 %v1184, %v1460
    %v1472 = vmul.f32 %v1189, %v1460
    %v1473 = vmul.f32 %v1194, %v1460
    %v1474 = vmul.f32 %v1199, %v1460
    %v1475 = vmul.f32 %v1204, %v1460
    %v1476 = vmul.f32 %v1209, %v1460
    %v1477 = vmul.f32 %v1214, %v1460
    %v1478 = vmul.f32 %v1219, %v1460
    %v1479 = vmul.f32 %v1224, %v1460
    %v1480 = vmul.f32 %v1229, %v1460
    %v1481 = vmul.f32 %v1234, %v1460
    %v1482 = vmul.f32 %v1239, %v1460
    %v1483 = vmul.f32 %v1244, %v1460
    %v1484 = vmul.f32 %v1249, %v1460
    %v1485 = vmul.f32 %v1254, %v1460
    %v1486 = vmul.f32 %v1259, %v1460
    %v1487 = vmul.f32 %v1264, %v1460
    %v1488 = vmul.f32 %v1269, %v1460
    %v1489 = vmul.f32 %v1274, %v1460
    %v1490 = vmul.f32 %v1279, %v1460
    %v1491 = vmul.f32 %v1284, %v1460
    %v1492 = vmul.f32 %v1289, %v1460
    %v1493 = vmul.f32 %v1294, %v1460
    %v1494 = vmul.f32 %v1299, %v1460
    %v1495 = vmul.f32 %v1304, %v1460
    %v1496 = vmul.f32 %v1309, %v1460
    %v1497 = vmul.f32 %v1314, %v1460
    %v1498 = vmul.f32 %v1319, %v1460
    %v1499 = vmul.f32 %v1324, %v1460
    %v1500 = vmul.f32 %v1329, %v1460
    %v1501 = vmul.f32 %v1334, %v1460
    %v1502 = vmul.f32 %v1339, %v1460
    %v1503 = vmul.f32 %v1344, %v1460
    %v1504 = vmul.f32 %v1349, %v1460
    %v1505 = vmul.f32 %v1354, %v1460
    %v1506 = vmul.f32 %v1359, %v1460
    %v1507 = vmul.f32 %v1364, %v1460
    %v1508 = vmul.f32 %v1369, %v1460
    %v1509 = vmul.f32 %v1374, %v1460
    %v1510 = vmul.f32 %v1379, %v1460
    %v1511 = vmul.f32 %v1384, %v1460
    %v1512 = vmul.f32 %v1389, %v1460
    %v1513 = vmul.f32 %v1394, %v1460
    %v1514 = vmul.f32 %v1399, %v1460
    %v1515 = vmul.f32 %v1404, %v1460
    %v1516 = vmul.f32 %v1409, %v1460
    %v1517 = vmul.f32 %v1414, %v1460
    %v1518 = vmul.f32 %v1419, %v1460
    %v1519 = vmul.f32 %v1424, %v1460
    %v1520 = vmul.f32 %v1429, %v1460
    %v1521 = vmul.f32 %v1434, %v1460
    %v1522 = vmul.f32 %v1439, %v1460
    %v1523 = vmul.f32 %v1444, %v1460
    %v1524 = vmul.f32 %v1449, %v1460
    %v1525 = vmul.f32 %v1454, %v1460
    %v1526 = vadd.f32 %v1007, %v1462
    %v1527 = vadd.f32 %v1008, %v1463
    %v1528 = vadd.f32 %v1009, %v1464
    %v1529 = vadd.f32 %v1010, %v1465
    %v1530 = vadd.f32 %v1011, %v1466
    %v1531 = vadd.f32 %v1012, %v1467
    %v1532 = vadd.f32 %v1013, %v1468
    %v1533 = vadd.f32 %v1014, %v1469
    %v1534 = vadd.f32 %v1015, %v1470
    %v1535 = vadd.f32 %v1016, %v1471
    %v1536 = vadd.f32 %v1017, %v1472
    %v1537 = vadd.f32 %v1018, %v1473
    %v1538 = vadd.f32 %v1019, %v1474
    %v1539 = vadd.f32 %v1020, %v1475
    %v1540 = vadd.f32 %v1021, %v1476
    %v1541 = vadd.f32 %v1022, %v1477
    %v1542 = vadd.f32 %v1023, %v1478
    %v1543 = vadd.f32 %v1024, %v1479
    %v1544 = vadd.f32 %v1025, %v1480
    %v1545 = vadd.f32 %v1026, %v1481
    %v1546 = vadd.f32 %v1027, %v1482
    %v1547 = vadd.f32 %v1028, %v1483
    %v1548 = vadd.f32 %v1029, %v1484
    %v1549 = vadd.f32 %v1030, %v1485
    %v1550 = vadd.f32 %v1031, %v1486
    %v1551 = vadd.f32 %v1032, %v1487
    %v1552 = vadd.f32 %v1033, %v1488
    %v1553 = vadd.f32 %v1034, %v1489
    %v1554 = vadd.f32 %v1035, %v1490
    %v1555 = vadd.f32 %v1036, %v1491
    %v1556 = vadd.f32 %v1037, %v1492
    %v1557 = vadd.f32 %v1038, %v1493
    %v1558 = vadd.f32 %v1039, %v1494
    %v1559 = vadd.f32 %v1040, %v1495
    %v1560 = vadd.f32 %v1041, %v1496
    %v1561 = vadd.f32 %v1042, %v1497
    %v1562 = vadd.f32 %v1043, %v1498
    %v1563 = vadd.f32 %v1044, %v1499
    %v1564 = vadd.f32 %v1045, %v1500
    %v1565 = vadd.f32 %v1046, %v1501
    %v1566 = vadd.f32 %v1047, %v1502
    %v1567 = vadd.f32 %v1048, %v1503
    %v1568 = vadd.f32 %v1049, %v1504
    %v1569 = vadd.f32 %v1050, %v1505
    %v1570 = vadd.f32 %v1051, %v1506
    %v1571 = vadd.f32 %v1052, %v1507
    %v1572 = vadd.f32 %v1053, %v1508
    %v1573 = vadd.f32 %v1054, %v1509
    %v1574 = vadd.f32 %v1055, %v1510
    %v1575 = vadd.f32 %v1056, %v1511
    %v1576 = vadd.f32 %v1057, %v1512
    %v1577 = vadd.f32 %v1058, %v1513
    %v1578 = vadd.f32 %v1059, %v1514
    %v1579 = vadd.f32 %v1060, %v1515
    %v1580 = vadd.f32 %v1061, %v1516
    %v1581 = vadd.f32 %v1062, %v1517
    %v1582 = vadd.f32 %v1063, %v1518
    %v1583 = vadd.f32 %v1064, %v1519
    %v1584 = vadd.f32 %v1065, %v1520
    %v1585 = vadd.f32 %v1066, %v1521
    %v1586 = vadd.f32 %v1067, %v1522
    %v1587 = vadd.f32 %v1068, %v1523
    %v1588 = vadd.f32 %v1069, %v1524
    %v1589 = vadd.f32 %v1070, %v1525
    %vm1590 = vcmp.ge.f32.partialorder %v1526, 0.0
    %vm1591 = vcmp.ge.f32.partialorder %v1527, 0.0
    %vm1592 = vcmp.ge.f32.partialorder %v1528, 0.0
    %vm1593 = vcmp.ge.f32.partialorder %v1529, 0.0
    %vm1594 = vcmp.ge.f32.partialorder %v1530, 0.0
    %vm1595 = vcmp.ge.f32.partialorder %v1531, 0.0
    %vm1596 = vcmp.ge.f32.partialorder %v1532, 0.0
    %vm1597 = vcmp.ge.f32.partialorder %v1533, 0.0
    %vm1598 = vcmp.ge.f32.partialorder %v1534, 0.0
    %vm1599 = vcmp.ge.f32.partialorder %v1535, 0.0
    %vm1600 = vcmp.ge.f32.partialorder %v1536, 0.0
    %vm1601 = vcmp.ge.f32.partialorder %v1537, 0.0
    %vm1602 = vcmp.ge.f32.partialorder %v1538, 0.0
    %vm1603 = vcmp.ge.f32.partialorder %v1539, 0.0
    %vm1604 = vcmp.ge.f32.partialorder %v1540, 0.0
    %vm1605 = vcmp.ge.f32.partialorder %v1541, 0.0
    %vm1606 = vcmp.ge.f32.partialorder %v1542, 0.0
    %vm1607 = vcmp.ge.f32.partialorder %v1543, 0.0
    %vm1608 = vcmp.ge.f32.partialorder %v1544, 0.0
    %vm1609 = vcmp.ge.f32.partialorder %v1545, 0.0
    %vm1610 = vcmp.ge.f32.partialorder %v1546, 0.0
    %vm1611 = vcmp.ge.f32.partialorder %v1547, 0.0
    %vm1612 = vcmp.ge.f32.partialorder %v1548, 0.0
    %vm1613 = vcmp.ge.f32.partialorder %v1549, 0.0
    %vm1614 = vcmp.ge.f32.partialorder %v1550, 0.0
    %vm1615 = vcmp.ge.f32.partialorder %v1551, 0.0
    %vm1616 = vcmp.ge.f32.partialorder %v1552, 0.0
    %vm1617 = vcmp.ge.f32.partialorder %v1553, 0.0
    %vm1618 = vcmp.ge.f32.partialorder %v1554, 0.0
    %vm1619 = vcmp.ge.f32.partialorder %v1555, 0.0
    %vm1620 = vcmp.ge.f32.partialorder %v1556, 0.0
    %vm1621 = vcmp.ge.f32.partialorder %v1557, 0.0
    %vm1622 = vcmp.ge.f32.partialorder %v1558, 0.0
    %vm1623 = vcmp.ge.f32.partialorder %v1559, 0.0
    %vm1624 = vcmp.ge.f32.partialorder %v1560, 0.0
    %vm1625 = vcmp.ge.f32.partialorder %v1561, 0.0
    %vm1626 = vcmp.ge.f32.partialorder %v1562, 0.0
    %vm1627 = vcmp.ge.f32.partialorder %v1563, 0.0
    %vm1628 = vcmp.ge.f32.partialorder %v1564, 0.0
    %vm1629 = vcmp.ge.f32.partialorder %v1565, 0.0
    %vm1630 = vcmp.ge.f32.partialorder %v1566, 0.0
    %vm1631 = vcmp.ge.f32.partialorder %v1567, 0.0
    %vm1632 = vcmp.ge.f32.partialorder %v1568, 0.0
    %vm1633 = vcmp.ge.f32.partialorder %v1569, 0.0
    %vm1634 = vcmp.ge.f32.partialorder %v1570, 0.0
    %vm1635 = vcmp.ge.f32.partialorder %v1571, 0.0
    %vm1636 = vcmp.ge.f32.partialorder %v1572, 0.0
    %vm1637 = vcmp.ge.f32.partialorder %v1573, 0.0
    %vm1638 = vcmp.ge.f32.partialorder %v1574, 0.0
    %vm1639 = vcmp.ge.f32.partialorder %v1575, 0.0
    %vm1640 = vcmp.ge.f32.partialorder %v1576, 0.0
    %vm1641 = vcmp.ge.f32.partialorder %v1577, 0.0
    %vm1642 = vcmp.ge.f32.partialorder %v1578, 0.0
    %vm1643 = vcmp.ge.f32.partialorder %v1579, 0.0
    %vm1644 = vcmp.ge.f32.partialorder %v1580, 0.0
    %vm1645 = vcmp.ge.f32.partialorder %v1581, 0.0
    %vm1646 = vcmp.ge.f32.partialorder %v1582, 0.0
    %vm1647 = vcmp.ge.f32.partialorder %v1583, 0.0
    %vm1648 = vcmp.ge.f32.partialorder %v1584, 0.0
    %vm1649 = vcmp.ge.f32.partialorder %v1585, 0.0
    %vm1650 = vcmp.ge.f32.partialorder %v1586, 0.0
    %vm1651 = vcmp.ge.f32.partialorder %v1587, 0.0
    %vm1652 = vcmp.ge.f32.partialorder %v1588, 0.0
    %vm1653 = vcmp.ge.f32.partialorder %v1589, 0.0
    %v1654 = vmul.f32 %v1526, 0.2
    %v1655 = vmul.f32 %v1527, 0.2
    %v1656 = vmul.f32 %v1528, 0.2
    %v1657 = vmul.f32 %v1529, 0.2
    %v1658 = vmul.f32 %v1530, 0.2
    %v1659 = vmul.f32 %v1531, 0.2
    %v1660 = vmul.f32 %v1532, 0.2
    %v1661 = vmul.f32 %v1533, 0.2
    %v1662 = vmul.f32 %v1534, 0.2
    %v1663 = vmul.f32 %v1535, 0.2
    %v1664 = vmul.f32 %v1536, 0.2
    %v1665 = vmul.f32 %v1537, 0.2
    %v1666 = vmul.f32 %v1538, 0.2
    %v1667 = vmul.f32 %v1539, 0.2
    %v1668 = vmul.f32 %v1540, 0.2
    %v1669 = vmul.f32 %v1541, 0.2
    %v1670 = vmul.f32 %v1542, 0.2
    %v1671 = vmul.f32 %v1543, 0.2
    %v1672 = vmul.f32 %v1544, 0.2
    %v1673 = vmul.f32 %v1545, 0.2
    %v1674 = vmul.f32 %v1546, 0.2
    %v1675 = vmul.f32 %v1547, 0.2
    %v1676 = vmul.f32 %v1548, 0.2
    %v1677 = vmul.f32 %v1549, 0.2
    %v1678 = vmul.f32 %v1550, 0.2
    %v1679 = vmul.f32 %v1551, 0.2
    %v1680 = vmul.f32 %v1552, 0.2
    %v1681 = vmul.f32 %v1553, 0.2
    %v1682 = vmul.f32 %v1554, 0.2
    %v1683 = vmul.f32 %v1555, 0.2
    %v1684 = vmul.f32 %v1556, 0.2
    %v1685 = vmul.f32 %v1557, 0.2
    %v1686 = vmul.f32 %v1558, 0.2
    %v1687 = vmul.f32 %v1559, 0.2
    %v1688 = vmul.f32 %v1560, 0.2
    %v1689 = vmul.f32 %v1561, 0.2
    %v1690 = vmul.f32 %v1562, 0.2
    %v1691 = vmul.f32 %v1563, 0.2
    %v1692 = vmul.f32 %v1564, 0.2
    %v1693 = vmul.f32 %v1565, 0.2
    %v1694 = vmul.f32 %v1566, 0.2
    %v1695 = vmul.f32 %v1567, 0.2
    %v1696 = vmul.f32 %v1568, 0.2
    %v1697 = vmul.f32 %v1569, 0.2
    %v1698 = vmul.f32 %v1570, 0.2
    %v1699 = vmul.f32 %v1571, 0.2
    %v1700 = vmul.f32 %v1572, 0.2
    %v1701 = vmul.f32 %v1573, 0.2
    %v1702 = vmul.f32 %v1574, 0.2
    %v1703 = vmul.f32 %v1575, 0.2
    %v1704 = vmul.f32 %v1576, 0.2
    %v1705 = vmul.f32 %v1577, 0.2
    %v1706 = vmul.f32 %v1578, 0.2
    %v1707 = vmul.f32 %v1579, 0.2
    %v1708 = vmul.f32 %v1580, 0.2
    %v1709 = vmul.f32 %v1581, 0.2
    %v1710 = vmul.f32 %v1582, 0.2
    %v1711 = vmul.f32 %v1583, 0.2
    %v1712 = vmul.f32 %v1584, 0.2
    %v1713 = vmul.f32 %v1585, 0.2
    %v1714 = vmul.f32 %v1586, 0.2
    %v1715 = vmul.f32 %v1587, 0.2
    %v1716 = vmul.f32 %v1588, 0.2
    %v1717 = vmul.f32 %v1589, 0.2
    %v1718 = vsel %vm1590, %v1526, %v1654
    %v1719 = vsel %vm1591, %v1527, %v1655
    %v1720 = vsel %vm1592, %v1528, %v1656
    %v1721 = vsel %vm1593, %v1529, %v1657
    %v1722 = vsel %vm1594, %v1530, %v1658
    %v1723 = vsel %vm1595, %v1531, %v1659
    %v1724 = vsel %vm1596, %v1532, %v1660
    %v1725 = vsel %vm1597, %v1533, %v1661
    %v1726 = vsel %vm1598, %v1534, %v1662
    %v1727 = vsel %vm1599, %v1535, %v1663
    %v1728 = vsel %vm1600, %v1536, %v1664
    %v1729 = vsel %vm1601, %v1537, %v1665
    %v1730 = vsel %vm1602, %v1538, %v1666
    %v1731 = vsel %vm1603, %v1539, %v1667
    %v1732 = vsel %vm1604, %v1540, %v1668
    %v1733 = vsel %vm1605, %v1541, %v1669
    %v1734 = vsel %vm1606, %v1542, %v1670
    %v1735 = vsel %vm1607, %v1543, %v1671
    %v1736 = vsel %vm1608, %v1544, %v1672
    %v1737 = vsel %vm1609, %v1545, %v1673
    %v1738 = vsel %vm1610, %v1546, %v1674
    %v1739 = vsel %vm1611, %v1547, %v1675
    %v1740 = vsel %vm1612, %v1548, %v1676
    %v1741 = vsel %vm1613, %v1549, %v1677
    %v1742 = vsel %vm1614, %v1550, %v1678
    %v1743 = vsel %vm1615, %v1551, %v1679
    %v1744 = vsel %vm1616, %v1552, %v1680
    %v1745 = vsel %vm1617, %v1553, %v1681
    %v1746 = vsel %vm1618, %v1554, %v1682
    %v1747 = vsel %vm1619, %v1555, %v1683
    %v1748 = vsel %vm1620, %v1556, %v1684
    %v1749 = vsel %vm1621, %v1557, %v1685
    %v1750 = vsel %vm1622, %v1558, %v1686
    %v1751 = vsel %vm1623, %v1559, %v1687
    %v1752 = vsel %vm1624, %v1560, %v1688
    %v1753 = vsel %vm1625, %v1561, %v1689
    %v1754 = vsel %vm1626, %v1562, %v1690
    %v1755 = vsel %vm1627, %v1563, %v1691
    %v1756 = vsel %vm1628, %v1564, %v1692
    %v1757 = vsel %vm1629, %v1565, %v1693
    %v1758 = vsel %vm1630, %v1566, %v1694
    %v1759 = vsel %vm1631, %v1567, %v1695
    %v1760 = vsel %vm1632, %v1568, %v1696
    %v1761 = vsel %vm1633, %v1569, %v1697
    %v1762 = vsel %vm1634, %v1570, %v1698
    %v1763 = vsel %vm1635, %v1571, %v1699
    %v1764 = vsel %vm1636, %v1572, %v1700
    %v1765 = vsel %vm1637, %v1573, %v1701
    %v1766 = vsel %vm1638, %v1574, %v1702
    %v1767 = vsel %vm1639, %v1575, %v1703
    %v1768 = vsel %vm1640, %v1576, %v1704
    %v1769 = vsel %vm1641, %v1577, %v1705
    %v1770 = vsel %vm1642, %v1578, %v1706
    %v1771 = vsel %vm1643, %v1579, %v1707
    %v1772 = vsel %vm1644, %v1580, %v1708
    %v1773 = vsel %vm1645, %v1581, %v1709
    %v1774 = vsel %vm1646, %v1582, %v1710
    %v1775 = vsel %vm1647, %v1583, %v1711
    %v1776 = vsel %vm1648, %v1584, %v1712
    %v1777 = vsel %vm1649, %v1585, %v1713
    %v1778 = vsel %vm1650, %v1586, %v1714
    %v1779 = vsel %vm1651, %v1587, %v1715
    %v1780 = vsel %vm1652, %v1588, %v1716
    %v1781 = vsel %vm1653, %v1589, %v1717
    %1782 = vst.msk [vmem:[%s5] sm:$0xff] %vm868, %v1718
    %1783 = vst.msk [vmem:[%s5 + $0x8] sm:$0xff] %vm868, %v1719
    %1784 = vst.msk [vmem:[%s5 + $0x10] sm:$0xff] %vm868, %v1720
    %1785 = vst.msk [vmem:[%s5 + $0x18] sm:$0xff] %vm868, %v1721
    %1786 = vst.msk [vmem:[%s5 + $0x20] sm:$0xff] %vm868, %v1722
    %1787 = vst.msk [vmem:[%s5 + $0x28] sm:$0xff] %vm868, %v1723
    %1788 = vst.msk [vmem:[%s5 + $0x30] sm:$0xff] %vm868, %v1724
    %1789 = vst.msk [vmem:[%s5 + $0x38] sm:$0xff] %vm868, %v1725
    %1790 = vst.msk [vmem:[%s5 + $0x40] sm:$0xff] %vm868, %v1726
    %1791 = vst.msk [vmem:[%s5 + $0x48] sm:$0xff] %vm868, %v1727
    %1792 = vst.msk [vmem:[%s5 + $0x50] sm:$0xff] %vm868, %v1728
    %1793 = vst.msk [vmem:[%s5 + $0x58] sm:$0xff] %vm868, %v1729
    %1794 = vst.msk [vmem:[%s5 + $0x60] sm:$0xff] %vm868, %v1730
    %1795 = vst.msk [vmem:[%s5 + $0x68] sm:$0xff] %vm868, %v1731
    %1796 = vst.msk [vmem:[%s5 + $0x70] sm:$0xff] %vm868, %v1732
    %1797 = vst.msk [vmem:[%s5 + $0x78] sm:$0xff] %vm868, %v1733
    %1798 = vst.msk [vmem:[%s5 + $0x80] sm:$0xff] %vm868, %v1734
    %1799 = vst.msk [vmem:[%s5 + $0x88] sm:$0xff] %vm868, %v1735
    %1800 = vst.msk [vmem:[%s5 + $0x90] sm:$0xff] %vm868, %v1736
    %1801 = vst.msk [vmem:[%s5 + $0x98] sm:$0xff] %vm868, %v1737
    %1802 = vst.msk [vmem:[%s5 + $0xa0] sm:$0xff] %vm868, %v1738
    %1803 = vst.msk [vmem:[%s5 + $0xa8] sm:$0xff] %vm868, %v1739
    %1804 = vst.msk [vmem:[%s5 + $0xb0] sm:$0xff] %vm868, %v1740
    %1805 = vst.msk [vmem:[%s5 + $0xb8] sm:$0xff] %vm868, %v1741
    %1806 = vst.msk [vmem:[%s5 + $0xc0] sm:$0xff] %vm868, %v1742
    %1807 = vst.msk [vmem:[%s5 + $0xc8] sm:$0xff] %vm868, %v1743
    %1808 = vst.msk [vmem:[%s5 + $0xd0] sm:$0xff] %vm868, %v1744
    %1809 = vst.msk [vmem:[%s5 + $0xd8] sm:$0xff] %vm868, %v1745
    %1810 = vst.msk [vmem:[%s5 + $0xe0] sm:$0xff] %vm868, %v1746
    %1811 = vst.msk [vmem:[%s5 + $0xe8] sm:$0xff] %vm868, %v1747
    %1812 = vst.msk [vmem:[%s5 + $0xf0] sm:$0xff] %vm868, %v1748
    %1813 = vst.msk [vmem:[%s5 + $0xf8] sm:$0xff] %vm868, %v1749
    %1814 = vst.msk [vmem:[%s5 + $0x100] sm:$0xff] %vm868, %v1750
    %1815 = vst.msk [vmem:[%s5 + $0x108] sm:$0xff] %vm868, %v1751
    %1816 = vst.msk [vmem:[%s5 + $0x110] sm:$0xff] %vm868, %v1752
    %1817 = vst.msk [vmem:[%s5 + $0x118] sm:$0xff] %vm868, %v1753
    %1818 = vst.msk [vmem:[%s5 + $0x120] sm:$0xff] %vm868, %v1754
    %1819 = vst.msk [vmem:[%s5 + $0x128] sm:$0xff] %vm868, %v1755
    %1820 = vst.msk [vmem:[%s5 + $0x130] sm:$0xff] %vm868, %v1756
    %1821 = vst.msk [vmem:[%s5 + $0x138] sm:$0xff] %vm868, %v1757
    %1822 = vst.msk [vmem:[%s5 + $0x140] sm:$0xff] %vm868, %v1758
    %1823 = vst.msk [vmem:[%s5 + $0x148] sm:$0xff] %vm868, %v1759
    %1824 = vst.msk [vmem:[%s5 + $0x150] sm:$0xff] %vm868, %v1760
    %1825 = vst.msk [vmem:[%s5 + $0x158] sm:$0xff] %vm868, %v1761
    %1826 = vst.msk [vmem:[%s5 + $0x160] sm:$0xff] %vm868, %v1762
    %1827 = vst.msk [vmem:[%s5 + $0x168] sm:$0xff] %vm868, %v1763
    %1828 = vst.msk [vmem:[%s5 + $0x170] sm:$0xff] %vm868, %v1764
    %1829 = vst.msk [vmem:[%s5 + $0x178] sm:$0xff] %vm868, %v1765
    %1830 = vst.msk [vmem:[%s5 + $0x180] sm:$0xff] %vm868, %v1766
    %1831 = vst.msk [vmem:[%s5 + $0x188] sm:$0xff] %vm868, %v1767
    %1832 = vst.msk [vmem:[%s5 + $0x190] sm:$0xff] %vm868, %v1768
    %1833 = vst.msk [vmem:[%s5 + $0x198] sm:$0xff] %vm868, %v1769
    %1834 = vst.msk [vmem:[%s5 + $0x1a0] sm:$0xff] %vm868, %v1770
    %1835 = vst.msk [vmem:[%s5 + $0x1a8] sm:$0xff] %vm868, %v1771
    %1836 = vst.msk [vmem:[%s5 + $0x1b0] sm:$0xff] %vm868, %v1772
    %1837 = vst.msk [vmem:[%s5 + $0x1b8] sm:$0xff] %vm868, %v1773
    %1838 = vst.msk [vmem:[%s5 + $0x1c0] sm:$0xff] %vm868, %v1774
    %1839 = vst.msk [vmem:[%s5 + $0x1c8] sm:$0xff] %vm868, %v1775
    %1840 = vst.msk [vmem:[%s5 + $0x1d0] sm:$0xff] %vm868, %v1776
    %1841 = vst.msk [vmem:[%s5 + $0x1d8] sm:$0xff] %vm868, %v1777
    %1842 = vst.msk [vmem:[%s5 + $0x1e0] sm:$0xff] %vm868, %v1778
    %1843 = vst.msk [vmem:[%s5 + $0x1e8] sm:$0xff] %vm868, %v1779
    %1844 = vst.msk [vmem:[%s5 + $0x1f0] sm:$0xff] %vm868, %v1780
    %1845 = vst.msk [vmem:[%s5 + $0x1f8] sm:$0xff] %vm868, %v1781
  $region29: #{styled_conv_block.6} parent=0 // pred_fallthru
    _
  // Predicated region
  $region30: #{styled_conv_block.6} parent=0 // pred_check
    _
  $region31: #{styled_conv_block.6} parent=0 // pred_check_branch
    %1847 = sbr.rel (0) target = $region33
  $region32: #{styled_conv_block.6} parent=0 // pred_region
    _
  $region33: #{styled_conv_block.6} parent=0 // pred_fallthru
    _
  // Predicated region
  $region34: #{styled_conv_block.6} parent=0 // pred_check
    _
  $region35: #{styled_conv_block.6} parent=0 // pred_check_branch
    %1849 = sbr.rel (0) target = $region37
  $region36: #{styled_conv_block.6} parent=0 // pred_region
    _
  $region37: #{styled_conv_block.6} parent=0 // pred_fallthru
    _

</llo_original>
